<compile_context>
chip_gen: v5e
topology: v5e:2x2
jax: 0.10.0
libtpu: 0.0.40
codegen_flags: <defaults>
</compile_context>

<pallas_src>
import math
import functools

import jax
import jax.numpy as jnp
from jax.experimental import pallas as pl
from jax.experimental.pallas import tpu as pltpu


# ----------------------------------------------------------------------------
# Pallas kernels
# ----------------------------------------------------------------------------
def encoder_stack_kernel(x_ref,
                         wqkv_ref, bqkv_ref, woh_ref, bo_ref,
                         ln1_g_ref, ln1_b_ref,
                         w1_ref, b1_ref, w2_ref, b2_ref,
                         ln2_g_ref, ln2_b_ref,
                         o_ref, act_ref, *, num_heads):
    """All encoder layers for one batch block [bb, L, D].

    Grid = (batch_blocks, num_layers); the layer axis is 'arbitrary' and the
    activation stays resident in the VMEM scratch `act_ref` across layers.
    """
    layer = pl.program_id(1)

    @pl.when(layer == 0)
    def _():
        act_ref[...] = x_ref[...].astype(jnp.float32)

    bb, L, D = act_ref.shape
    H = num_heads
    dh = D // H
    N = bb * L
    scale = 1.0 / math.sqrt(dh)

    x = act_ref[...].reshape(N, D)                                   # [N, D]

    # Fused QKV projection: a single [N, D] x [D, 3D] MXU matmul.
    qkv = jnp.dot(x, wqkv_ref[...], preferred_element_type=jnp.float32) + bqkv_ref[...]
    q = qkv[:, 0 * D:1 * D]
    k = qkv[:, 1 * D:2 * D]
    v = qkv[:, 2 * D:3 * D]

    def split_heads(t):
        # [N, D] -> [H*bb, L, dh]; combined batch index = h*bb + b.
        t3 = t.reshape(bb, L, D)
        return jnp.concatenate([t3[..., h * dh:(h + 1) * dh] for h in range(H)], axis=0)

    qh = split_heads(q)
    kh = split_heads(k)
    vh = split_heads(v)

    # All (batch, head) attention matmuls batched into two einsums (no per-head loop).
    s = jnp.einsum("xld,xmd->xlm", qh, kh,
                   preferred_element_type=jnp.float32) * scale        # [H*bb, L, L]
    s = s - jnp.max(s, axis=-1, keepdims=True)
    p = jnp.exp(s)
    p = p * pl.reciprocal(jnp.sum(p, axis=-1, keepdims=True), approx=True)
    ctx = jnp.einsum("xlm,xmd->xld", p, vh,
                     preferred_element_type=jnp.float32)              # [H*bb, L, dh]

    # Output projection with per-head weight slabs [H, dh, D]; summing over heads
    # replaces the lane-axis concatenate of head outputs.
    ctxh = ctx.reshape(H, N, dh)
    proj = jnp.einsum("hnd,hdf->hnf", ctxh, woh_ref[...],
                      preferred_element_type=jnp.float32)             # [H, N, D]
    attn = proj[0]
    for h in range(1, H):
        attn = attn + proj[h]
    attn = attn + bo_ref[...]

    def layernorm(y, g, b):
        mu = jnp.mean(y, axis=-1, keepdims=True)
        var = jnp.mean((y - mu) ** 2, axis=-1, keepdims=True)
        return (y - mu) * jax.lax.rsqrt(var + 1e-5) * g + b

    x1 = layernorm(x + attn, ln1_g_ref[...], ln1_b_ref[...])

    h1 = jnp.maximum(
        jnp.dot(x1, w1_ref[...], preferred_element_type=jnp.float32) + b1_ref[...], 0.0)
    ff = jnp.dot(h1, w2_ref[...], preferred_element_type=jnp.float32) + b2_ref[...]
    x2 = layernorm(x1 + ff, ln2_g_ref[...], ln2_b_ref[...])

    act_ref[...] = x2.reshape(bb, L, D)

    @pl.when(layer == pl.num_programs(1) - 1)
    def _():
        o_ref[...] = x2.reshape(bb, L, D).astype(o_ref.dtype)


def decoder_kernel(x_ref, w_ref, b_ref, o_ref):
    """Tied-weight output projection: logits tile = x @ E_tile.T + b_tile (no transpose)."""
    logits = jax.lax.dot_general(
        x_ref[...], w_ref[...],
        dimension_numbers=(((1,), (1,)), ((), ())),   # contract D with D (RHS is [tv, D])
        preferred_element_type=jnp.float32)
    o_ref[...] = (logits + b_ref[...]).astype(o_ref.dtype)


# ----------------------------------------------------------------------------
# Wrappers
# ----------------------------------------------------------------------------
_STACK_ORDER = ["wqkv", "bqkv", "woh", "bo", "ln1_g", "ln1_b",
                "w1", "b1", "w2", "b2", "ln2_g", "ln2_b"]


def stack_layer_params(layers, num_heads):
    """Stack per-layer params with a leading NUM_LAYERS dim; fuse QKV; head-split Wo."""
    D = layers[0]["wq"].shape[0]
    dh = D // num_heads

    def stk(fn):
        return jnp.stack([fn(lp) for lp in layers], axis=0)

    return dict(
        wqkv=stk(lambda lp: jnp.concatenate([lp["wq"], lp["wk"], lp["wv"]], axis=1)),
        bqkv=stk(lambda lp: jnp.concatenate([lp["bq"], lp["bk"], lp["bv"]], axis=1)),
        woh=stk(lambda lp: lp["wo"].reshape(num_heads, dh, D)),
        bo=stk(lambda lp: lp["bo"]),
        ln1_g=stk(lambda lp: lp["ln1_g"]), ln1_b=stk(lambda lp: lp["ln1_b"]),
        w1=stk(lambda lp: lp["w1"]), b1=stk(lambda lp: lp["b1"]),
        w2=stk(lambda lp: lp["w2"]), b2=stk(lambda lp: lp["b2"]),
        ln2_g=stk(lambda lp: lp["ln2_g"]), ln2_b=stk(lambda lp: lp["ln2_b"]),
    )


def encoder_stack(x, stacked, num_heads):
    B, L, D = x.shape
    num_layers = stacked["wqkv"].shape[0]

    # Keep two parallel batch blocks when possible (one per v7x TensorCore); fold the
    # remaining batch into each block so the matmul M dim grows with B.
    num_batch_blocks = 2 if (B >= 2 and B % 2 == 0) else 1
    bb = B // num_batch_blocks

    args = [stacked[name] for name in _STACK_ORDER]

    def weight_spec(a):
        rest = a.shape[1:]
        return pl.BlockSpec((pl.Squeezed(),) + rest,
                            lambda b, l, n=len(rest): (l,) + (0,) * n)

    in_specs = [pl.BlockSpec((bb, L, D), lambda b, l: (b, 0, 0))]
    in_specs += [weight_spec(a) for a in args]

    return pl.pallas_call(
        functools.partial(encoder_stack_kernel, num_heads=num_heads),
        grid=(num_batch_blocks, num_layers),
        in_specs=in_specs,
        out_specs=pl.BlockSpec((bb, L, D), lambda b, l: (b, 0, 0)),
        out_shape=jax.ShapeDtypeStruct((B, L, D), jnp.float32),
        scratch_shapes=[pltpu.VMEM((bb, L, D), jnp.float32)],
        compiler_params=pltpu.CompilerParams(
            dimension_semantics=("parallel", "arbitrary"),
            vmem_limit_bytes=32 * 1024 * 1024),
    )(x, *args)


def decoder(x2d, emb, bias, tv=256):
    M, D = x2d.shape
    V = emb.shape[0]
    if V % tv != 0:
        tv = 128 if V % 128 == 0 else V
    assert V % tv == 0 and M % 8 == 0, \
        "decoder tiling requires V % tv == 0 and (B*L) % 8 == 0"
    return pl.pallas_call(
        decoder_kernel,
        grid=(V // tv,),
        in_specs=[pl.BlockSpec((M, D), lambda j: (0, 0)),
                  pl.BlockSpec((tv, D), lambda j: (j, 0)),
                  pl.BlockSpec((1, tv), lambda j: (0, j))],
        out_specs=pl.BlockSpec((M, tv), lambda j: (0, j)),
        out_shape=jax.ShapeDtypeStruct((M, V), jnp.float32),
        compiler_params=pltpu.CompilerParams(
            dimension_semantics=("parallel",)),
    )(x2d, emb, bias)


def positional_encoding(L, D):
    pos = jnp.arange(L, dtype=jnp.float32)[:, None]
    div = jnp.exp(jnp.arange(0, D, 2, dtype=jnp.float32) * (-math.log(10000.0) / D))
    pe = jnp.zeros((L, D), jnp.float32)
    pe = pe.at[:, 0::2].set(jnp.sin(pos * div))
    pe = pe.at[:, 1::2].set(jnp.cos(pos * div))
    return pe


def transformer_lm_forward(src, targets, emb, layers, dec_b, num_heads):
    """src, targets: [B, L] int32 (targets unused by the forward, as in PyTorch)."""
    del targets
    B, L = src.shape
    D = emb.shape[1]
    # Glue: embedding gather, sqrt(D) scale, sinusoidal positional encoding.
    x = emb[src] * math.sqrt(D)
    x = x + positional_encoding(L, D)[None]
    # Hot path: one fused Pallas call for all encoder layers + tied-weight decoder.
    stacked = stack_layer_params(layers, num_heads)
    x = encoder_stack(x.astype(jnp.float32), stacked, num_heads)
    logits = decoder(x.reshape(B * L, D), emb, dec_b)
    return logits.reshape(B, L, -1)


# ----------------------------------------------------------------------------
# Deterministic parameter construction (synthetic, matches module shapes)
# ----------------------------------------------------------------------------
def make_params(key, vocab, D, inner, num_layers):
    keys = jax.random.split(key, 1 + num_layers)
    initrange = 0.1
    emb = jax.random.uniform(keys[0], (vocab, D), jnp.float32, -initrange, initrange)

    def lin(k, fan_in, shape):
        bound = 1.0 / math.sqrt(fan_in)
        return jax.random.uniform(k, shape, jnp.float32, -bound, bound)

    layers = []
    for l in range(num_layers):
        ks = jax.random.split(keys[1 + l], 6)
        layers.append(dict(
            wq=lin(ks[0], D, (D, D)), bq=jnp.zeros((1, D), jnp.float32),
            wk=lin(ks[1], D, (D, D)), bk=jnp.zeros((1, D), jnp.float32),
            wv=lin(ks[2], D, (D, D)), bv=jnp.zeros((1, D), jnp.float32),
            wo=lin(ks[3], D, (D, D)), bo=jnp.zeros((1, D), jnp.float32),
            ln1_g=jnp.ones((1, D), jnp.float32), ln1_b=jnp.zeros((1, D), jnp.float32),
            w1=lin(ks[4], D, (D, inner)), b1=jnp.zeros((1, inner), jnp.float32),
            w2=lin(ks[5], inner, (inner, D)), b2=jnp.zeros((1, D), jnp.float32),
            ln2_g=jnp.ones((1, D), jnp.float32), ln2_b=jnp.zeros((1, D), jnp.float32),
        ))
    dec_b = jnp.zeros((1, vocab), jnp.float32)
    return emb, layers, dec_b


if __name__ == "__main__":
    # Small shapes consistent with the module (vocab_size, hidden, heads, inner, layers).
    VOCAB, D, HEADS, INNER, NLAYERS = 512, 128, 2, 256, 2
    B, L = 2, 16

    key = jax.random.PRNGKey(0)
    kp, ks, kt = jax.random.split(key, 3)
    emb, layers, dec_b = make_params(kp, VOCAB, D, INNER, NLAYERS)

    src = jax.random.randint(ks, (B, L), 0, VOCAB, dtype=jnp.int32)
    targets = jax.random.randint(kt, (B, L), 0, VOCAB, dtype=jnp.int32)

    logits = transformer_lm_forward(src, targets, emb, layers, dec_b, HEADS)
    logits = jax.block_until_ready(logits)

    assert logits.shape == (B, L, VOCAB)
    assert bool(jnp.all(jnp.isfinite(logits)))
    print("KERNEL_OK")
</pallas_src>

<mosaic_0001>
module attributes {stable_mosaic.version = 11 : i64} {
  func.func @encoder_stack_kernel(%arg0: i32, %arg1: i32, %arg2: memref<1x16x128xf32, #tpu.memory_space<vmem>>, %arg3: memref<1x128x384xf32, #tpu.memory_space<vmem>>, %arg4: memref<1x1x384xf32, #tpu.memory_space<vmem>>, %arg5: memref<1x2x64x128xf32, #tpu.memory_space<vmem>>, %arg6: memref<1x1x128xf32, #tpu.memory_space<vmem>>, %arg7: memref<1x1x128xf32, #tpu.memory_space<vmem>>, %arg8: memref<1x1x128xf32, #tpu.memory_space<vmem>>, %arg9: memref<1x128x256xf32, #tpu.memory_space<vmem>>, %arg10: memref<1x1x256xf32, #tpu.memory_space<vmem>>, %arg11: memref<1x256x128xf32, #tpu.memory_space<vmem>>, %arg12: memref<1x1x128xf32, #tpu.memory_space<vmem>>, %arg13: memref<1x1x128xf32, #tpu.memory_space<vmem>>, %arg14: memref<1x1x128xf32, #tpu.memory_space<vmem>>, %arg15: memref<1x16x128xf32, #tpu.memory_space<vmem>>, %arg16: memref<1x16x128xf32, #tpu.memory_space<vmem>>) attributes {dimension_semantics = [#tpu.dimension_semantics<parallel>, #tpu.dimension_semantics<arbitrary>], iteration_bounds = array<i64: 2, 2>, scalar_prefetch = 0 : i64, scratch_operands = 1 : i64, tpu.core_type = #tpu.core_type<tc>, window_params = [{transform_indices = @transform_0, window_bounds = array<i64: 1, 16, 128>}, {transform_indices = @transform_1, window_bounds = array<i64: 1, 128, 384>}, {transform_indices = @transform_2, window_bounds = array<i64: 1, 1, 384>}, {transform_indices = @transform_3, window_bounds = array<i64: 1, 2, 64, 128>}, {transform_indices = @transform_4, window_bounds = array<i64: 1, 1, 128>}, {transform_indices = @transform_5, window_bounds = array<i64: 1, 1, 128>}, {transform_indices = @transform_6, window_bounds = array<i64: 1, 1, 128>}, {transform_indices = @transform_7, window_bounds = array<i64: 1, 128, 256>}, {transform_indices = @transform_8, window_bounds = array<i64: 1, 1, 256>}, {transform_indices = @transform_9, window_bounds = array<i64: 1, 256, 128>}, {transform_indices = @transform_10, window_bounds = array<i64: 1, 1, 128>}, {transform_indices = @transform_11, window_bounds = array<i64: 1, 1, 128>}, {transform_indices = @transform_12, window_bounds = array<i64: 1, 1, 128>}, {transform_indices = @transform_13, window_bounds = array<i64: 1, 16, 128>}]} {
    %c0_i32 = arith.constant 0 : i32
    %0 = arith.cmpi eq, %arg1, %c0_i32 : i32
    %1 = arith.extui %0 : i1 to i32
    %c0_i32_0 = arith.constant 0 : i32
    %2 = arith.cmpi ne, %1, %c0_i32_0 : i32
    scf.if %2 {
      %c0_63 = arith.constant 0 : index
      %c0_64 = arith.constant 0 : index
      %c0_65 = arith.constant 0 : index
      %128 = vector.load %arg2[%c0_63, %c0_64, %c0_65] : memref<1x16x128xf32, #tpu.memory_space<vmem>>, vector<1x16x128xf32>
      %c0_66 = arith.constant 0 : index
      %c0_67 = arith.constant 0 : index
      %c0_68 = arith.constant 0 : index
      %129 = vector.load %arg16[%c0_66, %c0_67, %c0_68] : memref<1x16x128xf32, #tpu.memory_space<vmem>>, vector<1x16x128xf32>
      tpu.vector_store %arg16[%c0_66, %c0_67, %c0_68], %128 {strides = array<i32>} : memref<1x16x128xf32, #tpu.memory_space<vmem>>, vector<1x16x128xf32>,
    } else {
    }
    %c0 = arith.constant 0 : index
    %c0_1 = arith.constant 0 : index
    %c0_2 = arith.constant 0 : index
    %3 = vector.load %arg16[%c0, %c0_1, %c0_2] : memref<1x16x128xf32, #tpu.memory_space<vmem>>, vector<1x16x128xf32>
    %4 = vector.shape_cast %3 : vector<1x16x128xf32> to vector<16x128xf32>
    %c0_3 = arith.constant 0 : index
    %c0_4 = arith.constant 0 : index
    %c0_5 = arith.constant 0 : index
    %5 = vector.load %arg3[%c0_3, %c0_4, %c0_5] : memref<1x128x384xf32, #tpu.memory_space<vmem>>, vector<1x128x384xf32>
    %6 = vector.shape_cast %5 : vector<1x128x384xf32> to vector<128x384xf32>
    %cst = arith.constant dense<0.000000e+00> : vector<16x384xf32>
    %7 = tpu.matmul %4, %6, %cst {dimension_numbers = #tpu.dot_dimension_numbers<[1], [0], [0], [1], [0, 0, 1, 1], [], []>} : vector<16x128xf32>, vector<128x384xf32>, vector<16x384xf32> -> vector<16x384xf32>
    %c0_6 = arith.constant 0 : index
    %c0_7 = arith.constant 0 : index
    %c0_8 = arith.constant 0 : index
    %8 = vector.load %arg4[%c0_6, %c0_7, %c0_8] : memref<1x1x384xf32, #tpu.memory_space<vmem>>, vector<1x1x384xf32>
    %9 = vector.shape_cast %8 : vector<1x1x384xf32> to vector<1x384xf32>
    %10 = vector.broadcast %9 : vector<1x384xf32> to vector<16x384xf32>
    %11 = arith.addf %7, %10 : vector<16x384xf32>
    %12 = vector.extract_strided_slice %11 {offsets = [0, 0], sizes = [16, 128], strides = [1, 1]} : vector<16x384xf32> to vector<16x128xf32>
    %13 = vector.extract_strided_slice %11 {offsets = [0, 128], sizes = [16, 128], strides = [1, 1]} : vector<16x384xf32> to vector<16x128xf32>
    %14 = vector.extract_strided_slice %11 {offsets = [0, 256], sizes = [16, 128], strides = [1, 1]} : vector<16x384xf32> to vector<16x128xf32>
    %15 = vector.shape_cast %12 : vector<16x128xf32> to vector<1x16x128xf32>
    %16 = vector.extract_strided_slice %15 {offsets = [0, 0, 0], sizes = [1, 16, 64], strides = [1, 1, 1]} : vector<1x16x128xf32> to vector<1x16x64xf32>
    %17 = vector.extract_strided_slice %15 {offsets = [0, 0, 64], sizes = [1, 16, 64], strides = [1, 1, 1]} : vector<1x16x128xf32> to vector<1x16x64xf32>
    %18 = tpu.concatenate %16, %17 in 0 : vector<1x16x64xf32>, vector<1x16x64xf32> -> vector<2x16x64xf32>
    %19 = vector.shape_cast %13 : vector<16x128xf32> to vector<1x16x128xf32>
    %20 = vector.extract_strided_slice %19 {offsets = [0, 0, 0], sizes = [1, 16, 64], strides = [1, 1, 1]} : vector<1x16x128xf32> to vector<1x16x64xf32>
    %21 = vector.extract_strided_slice %19 {offsets = [0, 0, 64], sizes = [1, 16, 64], strides = [1, 1, 1]} : vector<1x16x128xf32> to vector<1x16x64xf32>
    %22 = tpu.concatenate %20, %21 in 0 : vector<1x16x64xf32>, vector<1x16x64xf32> -> vector<2x16x64xf32>
    %23 = vector.shape_cast %14 : vector<16x128xf32> to vector<1x16x128xf32>
    %24 = vector.extract_strided_slice %23 {offsets = [0, 0, 0], sizes = [1, 16, 64], strides = [1, 1, 1]} : vector<1x16x128xf32> to vector<1x16x64xf32>
    %25 = vector.extract_strided_slice %23 {offsets = [0, 0, 64], sizes = [1, 16, 64], strides = [1, 1, 1]} : vector<1x16x128xf32> to vector<1x16x64xf32>
    %26 = tpu.concatenate %24, %25 in 0 : vector<1x16x64xf32>, vector<1x16x64xf32> -> vector<2x16x64xf32>
    "tpu.trace_start"() <{level = 10 : i32, message = "xld,xmd->xlm"}> : () -> ()
    %cst_9 = arith.constant dense<0.000000e+00> : vector<2x16x16xf32>
    %27 = tpu.matmul %18, %22, %cst_9 {dimension_numbers = #tpu.dot_dimension_numbers<[2], [2], [1], [1], [0, 0, 0, 1, 1, 1], [0], [0]>} : vector<2x16x64xf32>, vector<2x16x64xf32>, vector<2x16x16xf32> -> vector<2x16x16xf32>
    "tpu.trace_stop"() : () -> ()
    %cst_10 = arith.constant 1.250000e-01 : f32
    %28 = vector.broadcast %cst_10 : f32 to vector<2x16x16xf32>
    %29 = arith.mulf %27, %28 : vector<2x16x16xf32>
    %cst_11 = arith.constant dense<0xFF800000> : vector<2x16xf32>
    %30 = vector.multi_reduction <maximumf>, %29, %cst_11 [2] : vector<2x16x16xf32> to vector<2x16xf32>
    %31 = vector.shape_cast %30 : vector<2x16xf32> to vector<2x16x1xf32>
    %32 = vector.broadcast %31 : vector<2x16x1xf32> to vector<2x16x16xf32>
    %33 = arith.subf %29, %32 : vector<2x16x16xf32>
    %34 = math.exp %33 : vector<2x16x16xf32>
    %cst_12 = arith.constant dense<0.000000e+00> : vector<2x16xf32>
    %35 = vector.multi_reduction <add>, %34, %cst_12 [2] : vector<2x16x16xf32> to vector<2x16xf32>
    %36 = vector.shape_cast %35 : vector<2x16xf32> to vector<2x16x1xf32>
    %37 = tpu.reciprocal %36 {approx = true} : vector<2x16x1xf32> -> vector<2x16x1xf32>
    %38 = vector.broadcast %37 : vector<2x16x1xf32> to vector<2x16x16xf32>
    %39 = arith.mulf %34, %38 : vector<2x16x16xf32>
    "tpu.trace_start"() <{level = 10 : i32, message = "xlm,xmd->xld"}> : () -> ()
    %cst_13 = arith.constant dense<0.000000e+00> : vector<2x16x64xf32>
    %40 = tpu.matmul %39, %26, %cst_13 {dimension_numbers = #tpu.dot_dimension_numbers<[2], [1], [1], [2], [0, 0, 0, 1, 1, 2], [0], [0]>} : vector<2x16x16xf32>, vector<2x16x64xf32>, vector<2x16x64xf32> -> vector<2x16x64xf32>
    "tpu.trace_stop"() : () -> ()
    %c0_14 = arith.constant 0 : index
    %c0_15 = arith.constant 0 : index
    %c0_16 = arith.constant 0 : index
    %c0_17 = arith.constant 0 : index
    %41 = vector.load %arg5[%c0_14, %c0_15, %c0_16, %c0_17] : memref<1x2x64x128xf32, #tpu.memory_space<vmem>>, vector<1x2x64x128xf32>
    %42 = vector.shape_cast %41 : vector<1x2x64x128xf32> to vector<2x64x128xf32>
    "tpu.trace_start"() <{level = 10 : i32, message = "hnd,hdf->hnf"}> : () -> ()
    %cst_18 = arith.constant dense<0.000000e+00> : vector<2x16x128xf32>
    %43 = tpu.matmul %40, %42, %cst_18 {dimension_numbers = #tpu.dot_dimension_numbers<[2], [1], [1], [2], [0, 0, 0, 1, 1, 2], [0], [0]>} : vector<2x16x64xf32>, vector<2x64x128xf32>, vector<2x16x128xf32> -> vector<2x16x128xf32>
    "tpu.trace_stop"() : () -> ()
    %44 = vector.extract_strided_slice %43 {offsets = [0, 0, 0], sizes = [1, 16, 128], strides = [1, 1, 1]} : vector<2x16x128xf32> to vector<1x16x128xf32>
    %45 = vector.shape_cast %44 : vector<1x16x128xf32> to vector<16x128xf32>
    %46 = vector.extract_strided_slice %43 {offsets = [1, 0, 0], sizes = [1, 16, 128], strides = [1, 1, 1]} : vector<2x16x128xf32> to vector<1x16x128xf32>
    %47 = vector.shape_cast %46 : vector<1x16x128xf32> to vector<16x128xf32>
    %48 = arith.addf %45, %47 : vector<16x128xf32>
    %c0_19 = arith.constant 0 : index
    %c0_20 = arith.constant 0 : index
    %c0_21 = arith.constant 0 : index
    %49 = vector.load %arg6[%c0_19, %c0_20, %c0_21] : memref<1x1x128xf32, #tpu.memory_space<vmem>>, vector<1x1x128xf32>
    %50 = vector.shape_cast %49 : vector<1x1x128xf32> to vector<1x128xf32>
    %51 = vector.broadcast %50 : vector<1x128xf32> to vector<16x128xf32>
    %52 = arith.addf %48, %51 : vector<16x128xf32>
    %53 = arith.addf %4, %52 : vector<16x128xf32>
    %c0_22 = arith.constant 0 : index
    %c0_23 = arith.constant 0 : index
    %c0_24 = arith.constant 0 : index
    %54 = vector.load %arg7[%c0_22, %c0_23, %c0_24] : memref<1x1x128xf32, #tpu.memory_space<vmem>>, vector<1x1x128xf32>
    %55 = vector.shape_cast %54 : vector<1x1x128xf32> to vector<1x128xf32>
    %c0_25 = arith.constant 0 : index
    %c0_26 = arith.constant 0 : index
    %c0_27 = arith.constant 0 : index
    %56 = vector.load %arg8[%c0_25, %c0_26, %c0_27] : memref<1x1x128xf32, #tpu.memory_space<vmem>>, vector<1x1x128xf32>
    %57 = vector.shape_cast %56 : vector<1x1x128xf32> to vector<1x128xf32>
    %cst_28 = arith.constant dense<0.000000e+00> : vector<16xf32>
    %58 = vector.multi_reduction <add>, %53, %cst_28 [1] : vector<16x128xf32> to vector<16xf32>
    %59 = vector.shape_cast %58 : vector<16xf32> to vector<16x1xf32>
    %cst_29 = arith.constant 1.280000e+02 : f32
    %60 = vector.broadcast %cst_29 : f32 to vector<16x1xf32>
    %61 = arith.divf %59, %60 : vector<16x1xf32>
    %62 = vector.broadcast %61 : vector<16x1xf32> to vector<16x128xf32>
    %63 = arith.subf %53, %62 : vector<16x128xf32>
    %64 = arith.mulf %63, %63 : vector<16x128xf32>
    %cst_30 = arith.constant dense<0.000000e+00> : vector<16xf32>
    %65 = vector.multi_reduction <add>, %64, %cst_30 [1] : vector<16x128xf32> to vector<16xf32>
    %66 = vector.shape_cast %65 : vector<16xf32> to vector<16x1xf32>
    %cst_31 = arith.constant 1.280000e+02 : f32
    %67 = vector.broadcast %cst_31 : f32 to vector<16x1xf32>
    %68 = arith.divf %66, %67 : vector<16x1xf32>
    %69 = vector.broadcast %61 : vector<16x1xf32> to vector<16x128xf32>
    %70 = arith.subf %53, %69 : vector<16x128xf32>
    %cst_32 = arith.constant 9.99999974E-6 : f32
    %71 = vector.broadcast %cst_32 : f32 to vector<16x1xf32>
    %72 = arith.addf %68, %71 : vector<16x1xf32>
    %73 = math.rsqrt %72 : vector<16x1xf32>
    %74 = vector.broadcast %73 : vector<16x1xf32> to vector<16x128xf32>
    %75 = arith.mulf %70, %74 : vector<16x128xf32>
    %76 = vector.broadcast %55 : vector<1x128xf32> to vector<16x128xf32>
    %77 = arith.mulf %75, %76 : vector<16x128xf32>
    %78 = vector.broadcast %57 : vector<1x128xf32> to vector<16x128xf32>
    %79 = arith.addf %77, %78 : vector<16x128xf32>
    %c0_33 = arith.constant 0 : index
    %c0_34 = arith.constant 0 : index
    %c0_35 = arith.constant 0 : index
    %80 = vector.load %arg9[%c0_33, %c0_34, %c0_35] : memref<1x128x256xf32, #tpu.memory_space<vmem>>, vector<1x128x256xf32>
    %81 = vector.shape_cast %80 : vector<1x128x256xf32> to vector<128x256xf32>
    %cst_36 = arith.constant dense<0.000000e+00> : vector<16x256xf32>
    %82 = tpu.matmul %79, %81, %cst_36 {dimension_numbers = #tpu.dot_dimension_numbers<[1], [0], [0], [1], [0, 0, 1, 1], [], []>} : vector<16x128xf32>, vector<128x256xf32>, vector<16x256xf32> -> vector<16x256xf32>
    %c0_37 = arith.constant 0 : index
    %c0_38 = arith.constant 0 : index
    %c0_39 = arith.constant 0 : index
    %83 = vector.load %arg10[%c0_37, %c0_38, %c0_39] : memref<1x1x256xf32, #tpu.memory_space<vmem>>, vector<1x1x256xf32>
    %84 = vector.shape_cast %83 : vector<1x1x256xf32> to vector<1x256xf32>
    %85 = vector.broadcast %84 : vector<1x256xf32> to vector<16x256xf32>
    %86 = arith.addf %82, %85 : vector<16x256xf32>
    %cst_40 = arith.constant 0.000000e+00 : f32
    %87 = vector.broadcast %cst_40 : f32 to vector<16x256xf32>
    %88 = arith.maximumf %86, %87 : vector<16x256xf32>
    %c0_41 = arith.constant 0 : index
    %c0_42 = arith.constant 0 : index
    %c0_43 = arith.constant 0 : index
    %89 = vector.load %arg11[%c0_41, %c0_42, %c0_43] : memref<1x256x128xf32, #tpu.memory_space<vmem>>, vector<1x256x128xf32>
    %90 = vector.shape_cast %89 : vector<1x256x128xf32> to vector<256x128xf32>
    %cst_44 = arith.constant dense<0.000000e+00> : vector<16x128xf32>
    %91 = tpu.matmul %88, %90, %cst_44 {dimension_numbers = #tpu.dot_dimension_numbers<[1], [0], [0], [1], [0, 0, 1, 1], [], []>} : vector<16x256xf32>, vector<256x128xf32>, vector<16x128xf32> -> vector<16x128xf32>
    %c0_45 = arith.constant 0 : index
    %c0_46 = arith.constant 0 : index
    %c0_47 = arith.constant 0 : index
    %92 = vector.load %arg12[%c0_45, %c0_46, %c0_47] : memref<1x1x128xf32, #tpu.memory_space<vmem>>, vector<1x1x128xf32>
    %93 = vector.shape_cast %92 : vector<1x1x128xf32> to vector<1x128xf32>
    %94 = vector.broadcast %93 : vector<1x128xf32> to vector<16x128xf32>
    %95 = arith.addf %91, %94 : vector<16x128xf32>
    %96 = arith.addf %79, %95 : vector<16x128xf32>
    %c0_48 = arith.constant 0 : index
    %c0_49 = arith.constant 0 : index
    %c0_50 = arith.constant 0 : index
    %97 = vector.load %arg13[%c0_48, %c0_49, %c0_50] : memref<1x1x128xf32, #tpu.memory_space<vmem>>, vector<1x1x128xf32>
    %98 = vector.shape_cast %97 : vector<1x1x128xf32> to vector<1x128xf32>
    %c0_51 = arith.constant 0 : index
    %c0_52 = arith.constant 0 : index
    %c0_53 = arith.constant 0 : index
    %99 = vector.load %arg14[%c0_51, %c0_52, %c0_53] : memref<1x1x128xf32, #tpu.memory_space<vmem>>, vector<1x1x128xf32>
    %100 = vector.shape_cast %99 : vector<1x1x128xf32> to vector<1x128xf32>
    %cst_54 = arith.constant dense<0.000000e+00> : vector<16xf32>
    %101 = vector.multi_reduction <add>, %96, %cst_54 [1] : vector<16x128xf32> to vector<16xf32>
    %102 = vector.shape_cast %101 : vector<16xf32> to vector<16x1xf32>
    %cst_55 = arith.constant 1.280000e+02 : f32
    %103 = vector.broadcast %cst_55 : f32 to vector<16x1xf32>
    %104 = arith.divf %102, %103 : vector<16x1xf32>
    %105 = vector.broadcast %104 : vector<16x1xf32> to vector<16x128xf32>
    %106 = arith.subf %96, %105 : vector<16x128xf32>
    %107 = arith.mulf %106, %106 : vector<16x128xf32>
    %cst_56 = arith.constant dense<0.000000e+00> : vector<16xf32>
    %108 = vector.multi_reduction <add>, %107, %cst_56 [1] : vector<16x128xf32> to vector<16xf32>
    %109 = vector.shape_cast %108 : vector<16xf32> to vector<16x1xf32>
    %cst_57 = arith.constant 1.280000e+02 : f32
    %110 = vector.broadcast %cst_57 : f32 to vector<16x1xf32>
    %111 = arith.divf %109, %110 : vector<16x1xf32>
    %112 = vector.broadcast %104 : vector<16x1xf32> to vector<16x128xf32>
    %113 = arith.subf %96, %112 : vector<16x128xf32>
    %cst_58 = arith.constant 9.99999974E-6 : f32
    %114 = vector.broadcast %cst_58 : f32 to vector<16x1xf32>
    %115 = arith.addf %111, %114 : vector<16x1xf32>
    %116 = math.rsqrt %115 : vector<16x1xf32>
    %117 = vector.broadcast %116 : vector<16x1xf32> to vector<16x128xf32>
    %118 = arith.mulf %113, %117 : vector<16x128xf32>
    %119 = vector.broadcast %98 : vector<1x128xf32> to vector<16x128xf32>
    %120 = arith.mulf %118, %119 : vector<16x128xf32>
    %121 = vector.broadcast %100 : vector<1x128xf32> to vector<16x128xf32>
    %122 = arith.addf %120, %121 : vector<16x128xf32>
    %123 = vector.shape_cast %122 : vector<16x128xf32> to vector<1x16x128xf32>
    %c0_59 = arith.constant 0 : index
    %c0_60 = arith.constant 0 : index
    %c0_61 = arith.constant 0 : index
    %124 = vector.load %arg16[%c0_59, %c0_60, %c0_61] : memref<1x16x128xf32, #tpu.memory_space<vmem>>, vector<1x16x128xf32>
    tpu.vector_store %arg16[%c0_59, %c0_60, %c0_61], %123 {strides = array<i32>} : memref<1x16x128xf32, #tpu.memory_space<vmem>>, vector<1x16x128xf32>,
    %c1_i32 = arith.constant 1 : i32
    %125 = arith.cmpi eq, %arg1, %c1_i32 : i32
    %126 = arith.extui %125 : i1 to i32
    %c0_i32_62 = arith.constant 0 : i32
    %127 = arith.cmpi ne, %126, %c0_i32_62 : i32
    scf.if %127 {
      %128 = vector.shape_cast %122 : vector<16x128xf32> to vector<1x16x128xf32>
      %c0_63 = arith.constant 0 : index
      %c0_64 = arith.constant 0 : index
      %c0_65 = arith.constant 0 : index
      %129 = vector.load %arg15[%c0_63, %c0_64, %c0_65] : memref<1x16x128xf32, #tpu.memory_space<vmem>>, vector<1x16x128xf32>
      tpu.vector_store %arg15[%c0_63, %c0_64, %c0_65], %128 {strides = array<i32>} : memref<1x16x128xf32, #tpu.memory_space<vmem>>, vector<1x16x128xf32>,
    } else {
    }
    return
  }
  func.func @transform_0(%arg0: i32, %arg1: i32) -> (i32, i32, i32) {
    %c0_i32 = arith.constant 0 : i32
    %c0_i32_0 = arith.constant 0 : i32
    %c0_i32_1 = arith.constant 0 : i32
    return %arg0, %c0_i32, %c0_i32_0 : i32, i32, i32
  }
  func.func @transform_1(%arg0: i32, %arg1: i32) -> (i32, i32, i32) {
    %c0_i32 = arith.constant 0 : i32
    %c0_i32_0 = arith.constant 0 : i32
    %c0_i32_1 = arith.constant 0 : i32
    return %arg1, %c0_i32, %c0_i32_0 : i32, i32, i32
  }
  func.func @transform_2(%arg0: i32, %arg1: i32) -> (i32, i32, i32) {
    %c0_i32 = arith.constant 0 : i32
    %c0_i32_0 = arith.constant 0 : i32
    %c0_i32_1 = arith.constant 0 : i32
    return %arg1, %c0_i32, %c0_i32_0 : i32, i32, i32
  }
  func.func @transform_3(%arg0: i32, %arg1: i32) -> (i32, i32, i32, i32) {
    %c0_i32 = arith.constant 0 : i32
    %c0_i32_0 = arith.constant 0 : i32
    %c0_i32_1 = arith.constant 0 : i32
    %c0_i32_2 = arith.constant 0 : i32
    return %arg1, %c0_i32, %c0_i32_0, %c0_i32_1 : i32, i32, i32, i32
  }
  func.func @transform_4(%arg0: i32, %arg1: i32) -> (i32, i32, i32) {
    %c0_i32 = arith.constant 0 : i32
    %c0_i32_0 = arith.constant 0 : i32
    %c0_i32_1 = arith.constant 0 : i32
    return %arg1, %c0_i32, %c0_i32_0 : i32, i32, i32
  }
  func.func @transform_5(%arg0: i32, %arg1: i32) -> (i32, i32, i32) {
    %c0_i32 = arith.constant 0 : i32
    %c0_i32_0 = arith.constant 0 : i32
    %c0_i32_1 = arith.constant 0 : i32
    return %arg1, %c0_i32, %c0_i32_0 : i32, i32, i32
  }
  func.func @transform_6(%arg0: i32, %arg1: i32) -> (i32, i32, i32) {
    %c0_i32 = arith.constant 0 : i32
    %c0_i32_0 = arith.constant 0 : i32
    %c0_i32_1 = arith.constant 0 : i32
    return %arg1, %c0_i32, %c0_i32_0 : i32, i32, i32
  }
  func.func @transform_7(%arg0: i32, %arg1: i32) -> (i32, i32, i32) {
    %c0_i32 = arith.constant 0 : i32
    %c0_i32_0 = arith.constant 0 : i32
    %c0_i32_1 = arith.constant 0 : i32
    return %arg1, %c0_i32, %c0_i32_0 : i32, i32, i32
  }
  func.func @transform_8(%arg0: i32, %arg1: i32) -> (i32, i32, i32) {
    %c0_i32 = arith.constant 0 : i32
    %c0_i32_0 = arith.constant 0 : i32
    %c0_i32_1 = arith.constant 0 : i32
    return %arg1, %c0_i32, %c0_i32_0 : i32, i32, i32
  }
  func.func @transform_9(%arg0: i32, %arg1: i32) -> (i32, i32, i32) {
    %c0_i32 = arith.constant 0 : i32
    %c0_i32_0 = arith.constant 0 : i32
    %c0_i32_1 = arith.constant 0 : i32
    return %arg1, %c0_i32, %c0_i32_0 : i32, i32, i32
  }
  func.func @transform_10(%arg0: i32, %arg1: i32) -> (i32, i32, i32) {
    %c0_i32 = arith.constant 0 : i32
    %c0_i32_0 = arith.constant 0 : i32
    %c0_i32_1 = arith.constant 0 : i32
    return %arg1, %c0_i32, %c0_i32_0 : i32, i32, i32
  }
  func.func @transform_11(%arg0: i32, %arg1: i32) -> (i32, i32, i32) {
    %c0_i32 = arith.constant 0 : i32
    %c0_i32_0 = arith.constant 0 : i32
    %c0_i32_1 = arith.constant 0 : i32
    return %arg1, %c0_i32, %c0_i32_0 : i32, i32, i32
  }
  func.func @transform_12(%arg0: i32, %arg1: i32) -> (i32, i32, i32) {
    %c0_i32 = arith.constant 0 : i32
    %c0_i32_0 = arith.constant 0 : i32
    %c0_i32_1 = arith.constant 0 : i32
    return %arg1, %c0_i32, %c0_i32_0 : i32, i32, i32
  }
  func.func @transform_13(%arg0: i32, %arg1: i32) -> (i32, i32, i32) {
    %c0_i32 = arith.constant 0 : i32
    %c0_i32_0 = arith.constant 0 : i32
    %c0_i32_1 = arith.constant 0 : i32
    return %arg0, %c0_i32, %c0_i32_0 : i32, i32, i32
  }
}

</mosaic_0001>

<llo_original>
// kernel: tpu_custom_call.1
$region0: #{tpu_custom_call.1}
  #allocation0 [shape = 'u32[]', space=smem, size = 0x4, offset = 0x4, fixed_abs, tag = 'smem constant byte address 0x4 - core index']
  #allocation1 [shape = 'u32[72,128]{1,0:T(1,128)}', space=vmem, size = 0x9000, scoped, tag = 'internal scratch']
  #allocation2 [shape = 'f32[1,16,128]{2,1,0:T(8,128)}', space=vmem, size = 0x2000, scoped, tag = 'scratch operand']
  %s0 = inlined_call_operand.hbm [shape: f32[2,16,128], index: 0, kind: input, shape index: {}]
  %s1 = inlined_call_operand.hbm [shape: f32[2,128,384], index: 1, kind: input, shape index: {}]
  %s2 = inlined_call_operand.hbm [shape: f32[2,1,384], index: 2, kind: input, shape index: {}]
  %s3 = inlined_call_operand.hbm [shape: f32[2,2,64,128], index: 3, kind: input, shape index: {}]
  %s4 = inlined_call_operand.vmem [shape: f32[2,1,128], index: 4, kind: input, shape index: {}]
  %s5 = inlined_call_operand.hbm [shape: f32[2,1,128], index: 5, kind: input, shape index: {}]
  %s6 = inlined_call_operand.hbm [shape: f32[2,1,128], index: 6, kind: input, shape index: {}]
  %s7 = inlined_call_operand.hbm [shape: f32[2,128,256], index: 7, kind: input, shape index: {}]
  %s8 = inlined_call_operand.vmem [shape: f32[2,1,256], index: 8, kind: input, shape index: {}]
  %s9 = inlined_call_operand.hbm [shape: f32[2,256,128], index: 9, kind: input, shape index: {}]
  %s10 = inlined_call_operand.vmem [shape: f32[2,1,128], index: 10, kind: input, shape index: {}]
  %s11 = inlined_call_operand.vmem [shape: f32[2,1,128], index: 11, kind: input, shape index: {}]
  %s12 = inlined_call_operand.hbm [shape: f32[2,1,128], index: 12, kind: input, shape index: {}]
  %s13 = inlined_call_operand.hbm [shape: f32[2,16,128], index: 13, kind: output, shape index: {}]
  %s14 = sld [smem:[#allocation0]]
  $region129: #{tpu_custom_call.1} parent=0
    _
  %s16 = ssub.s32 1, %s14
  %s17 = scalar_select 0, %s16, %s14
  $region1: #{tpu_custom_call.1} parent=0
    #allocation3 [shape = 'u8[16384]{0}', space=vmem, size = 0x4000, scoped, tag = 'input window, operand 0']
    #allocation4 [shape = 's32[2]{0}', space=sflag, size = 0x8, scoped, tag = 'scoped memory for tpu_custom_call.1']
    #allocation5 [shape = 's32[2]{0}', space=sflag, size = 0x8, scoped, tag = 'scoped memory for tpu_custom_call.1']
    #allocation6 [shape = 'u8[393216]{0}', space=vmem, size = 0x60000, scoped, tag = 'input window, operand 1']
    #allocation7 [shape = 's32[2]{0}', space=sflag, size = 0x8, scoped, tag = 'scoped memory for tpu_custom_call.1']
    #allocation8 [shape = 'u8[3072]{0}', space=vmem, size = 0xc00, scoped, tag = 'input window, operand 2']
    #allocation9 [shape = 'u8[131072]{0}', space=vmem, size = 0x20000, scoped, tag = 'input window, operand 3']
    #allocation10 [shape = 's32[2]{0}', space=sflag, size = 0x8, scoped, tag = 'scoped memory for tpu_custom_call.1']
    #allocation11 [shape = 'u8[1024]{0}', space=vmem, size = 0x400, scoped, tag = 'input window, operand 5']
    #allocation12 [shape = 'u8[1024]{0}', space=vmem, size = 0x400, scoped, tag = 'input window, operand 6']
    #allocation13 [shape = 's32[2]{0}', space=sflag, size = 0x8, scoped, tag = 'scoped memory for tpu_custom_call.1']
    #allocation14 [shape = 'u8[262144]{0}', space=vmem, size = 0x40000, scoped, tag = 'input window, operand 7']
    #allocation15 [shape = 'u8[262144]{0}', space=vmem, size = 0x40000, scoped, tag = 'input window, operand 9']
    #allocation16 [shape = 's32[2]{0}', space=sflag, size = 0x8, scoped, tag = 'scoped memory for tpu_custom_call.1']
    #allocation17 [shape = 'u8[1024]{0}', space=vmem, size = 0x400, scoped, tag = 'input window, operand 12']
    #allocation18 [shape = 'u8[16384]{0}', space=vmem, size = 0x4000, scoped, tag = 'output window, operand 0']
    %18 = vsyncpa [#allocation4], 0
    %s19 = scalar_lea.sflag [#allocation4], 1
    %20 = vsyncpa %s19, 0
    %21 = vsyncpa [#allocation7], 0
    %s22 = scalar_lea.sflag [#allocation7], 1
    %23 = vsyncpa %s22, 0
    %24 = vsyncpa [#allocation10], 0
    %s25 = scalar_lea.sflag [#allocation10], 1
    %26 = vsyncpa %s25, 0
    %27 = vsyncpa [#allocation13], 0
    %s28 = scalar_lea.sflag [#allocation13], 1
    %29 = vsyncpa %s28, 0
    %30 = vsyncpa [#allocation16], 0
    %s31 = scalar_lea.sflag [#allocation16], 1
    %32 = vsyncpa %s31, 0
    %33 = vsyncpa [#allocation5], 0
    %s34 = scalar_lea.sflag [#allocation5], 1
    %35 = vsyncpa %s34, 0
    loop: start=0, step=1, limit=6
    $region2: #{tpu_custom_call.1} parent=1 // loop_pre_header
      _
    $region3: #{tpu_custom_call.1} parent=1 // loop_header
      %s37 = sphi 0, %s41
      %p38 = scmp.ge.s32.totalorder %s37, 6
      %s44 = sphi 0, %s56
      %s45 = sphi 0, %s52
      %s46 = sphi 0, %s44
      %s47 = sphi 0, %s45
      %s48 = sphi 0, %s46
      %s49 = sphi 0, %s47
      %s59 = sphi 0, %s61
      %s62 = sphi 0, %s59
      %s63 = sphi 0, %s62
      %s79 = sphi 0, %s63
      %s85 = sphi 0, %s87
      %s88 = sphi 0, %s85
      %s89 = sphi 0, %s88
      %s105 = sphi 0, %s89
      %s111 = sphi 0, %s113
      %s114 = sphi 0, %s111
      %s115 = sphi 0, %s114
      %s131 = sphi 0, %s115
      %s137 = sphi 0, %s139
      %s140 = sphi 0, %s137
      %s141 = sphi 0, %s140
      %s157 = sphi 0, %s141
      %s163 = sphi 0, %s165
      %s166 = sphi 0, %s163
      %s167 = sphi 0, %s166
      %s183 = sphi 0, %s167
      %s189 = sphi 0, %s191
      %s192 = sphi 0, %s189
      %s193 = sphi 0, %s192
      %s209 = sphi 0, %s193
      %s215 = sphi 0, %s217
      %s218 = sphi 0, %s215
      %s219 = sphi 0, %s218
      %s235 = sphi 0, %s219
      %s241 = sphi 0, %s243
      %s244 = sphi 0, %s241
      %s245 = sphi 0, %s244
      %s261 = sphi 0, %s245
      %s267 = sphi 0, %s269
      %s270 = sphi 0, %s267
      %s271 = sphi 0, %s270
      %s287 = sphi 0, %s271
      %s293 = sphi 0, %s295
      %s296 = sphi 0, %s293
      %s297 = sphi 0, %s296
      %s313 = sphi 0, %s297
      %s319 = sphi 0, %s321
      %s322 = sphi 0, %s319
      %s323 = sphi 0, %s322
      %s339 = sphi 0, %s323
      %s345 = sphi 0, %s347
      %s348 = sphi 0, %s345
      %s349 = sphi 0, %s348
      %s365 = sphi 0, %s349
      %s371 = sphi 0, %s373
      %s374 = sphi 0, %s371
      %s375 = sphi 0, %s374
      %s391 = sphi 0, %s375
      %s397 = sphi 0, %s399
      %s400 = sphi 0, %s397
      %s401 = sphi 0, %s400
      %s417 = sphi 0, %s401
    $region4: #{tpu_custom_call.1} parent=1 // loop_header_branch
      %40 = sbr.rel (%p38) target = $region8
    $region5: #{tpu_custom_call.1} parent=1 // loop_body
      %s42 = ssub.s32 %s37, 1
      %s43 = ssub.s32 %s37, 2
      %s50 = sadd.s32 1, %s45
      %p51 = scmp.ge.s32.totalorder %s50, 2
      %s52 = scalar_select %p51, 0, %s50
      %s53 = sadd.s32 1, %s44
      %s54 = scalar_select %p51, %s53, %s44
      %p55 = scmp.ge.s32.totalorder %s54, 2
      %s56 = scalar_select %p55, 0, %s54
      %s57 = ssub.s32 %s44, %s56
      %p58 = scmp.eq.s32.totalorder %s57, 0
      %s60 = sadd.s32 %s59, 1
      %s61 = scalar_select %p58, %s59, %s60
      %p64 = pneg %p58
      %p65 = scmp.eq.s32.totalorder %s37, 3
      %p66 = por %p64, %p65
      %p67 = scmp.ne.s32.totalorder %s59, %s62
      %p68 = scmp.eq.s32.totalorder %s37, 0
      %p69 = por %p67, %p68
      %p70 = scmp.ne.s32.totalorder %s59, %s62
      %p71 = scmp.eq.s32.totalorder %s42, 3
      %p72 = por %p70, %p71
      %p73 = scmp.ne.s32.totalorder %s62, %s63
      %p74 = scmp.eq.s32.totalorder %s42, 0
      %p75 = por %p73, %p74
      %p76 = scmp.ne.s32.totalorder %s62, %s63
      %p77 = scmp.eq.s32.totalorder %s43, 3
      %p78 = por %p76, %p77
      %p80 = scmp.ne.s32.totalorder %s63, %s79
      %p81 = scmp.eq.s32.totalorder %s43, 0
      %p82 = por %p80, %p81
      %s83 = ssub.s32 %s45, %s52
      %p84 = scmp.eq.s32.totalorder %s83, 0
      %s86 = sadd.s32 %s85, 1
      %s87 = scalar_select %p84, %s85, %s86
      %p90 = pneg %p84
      %p91 = scmp.eq.s32.totalorder %s37, 3
      %p92 = por %p90, %p91
      %p93 = scmp.ne.s32.totalorder %s85, %s88
      %p94 = scmp.eq.s32.totalorder %s37, 0
      %p95 = por %p93, %p94
      %p96 = scmp.ne.s32.totalorder %s85, %s88
      %p97 = scmp.eq.s32.totalorder %s42, 3
      %p98 = por %p96, %p97
      %p99 = scmp.ne.s32.totalorder %s88, %s89
      %p100 = scmp.eq.s32.totalorder %s42, 0
      %p101 = por %p99, %p100
      %p102 = scmp.ne.s32.totalorder %s88, %s89
      %p103 = scmp.eq.s32.totalorder %s43, 3
      %p104 = por %p102, %p103
      %p106 = scmp.ne.s32.totalorder %s89, %s105
      %p107 = scmp.eq.s32.totalorder %s43, 0
      %p108 = por %p106, %p107
      %s109 = ssub.s32 %s45, %s52
      %p110 = scmp.eq.s32.totalorder %s109, 0
      %s112 = sadd.s32 %s111, 1
      %s113 = scalar_select %p110, %s111, %s112
      %p116 = pneg %p110
      %p117 = scmp.eq.s32.totalorder %s37, 3
      %p118 = por %p116, %p117
      %p119 = scmp.ne.s32.totalorder %s111, %s114
      %p120 = scmp.eq.s32.totalorder %s37, 0
      %p121 = por %p119, %p120
      %p122 = scmp.ne.s32.totalorder %s111, %s114
      %p123 = scmp.eq.s32.totalorder %s42, 3
      %p124 = por %p122, %p123
      %p125 = scmp.ne.s32.totalorder %s114, %s115
      %p126 = scmp.eq.s32.totalorder %s42, 0
      %p127 = por %p125, %p126
      %p128 = scmp.ne.s32.totalorder %s114, %s115
      %p129 = scmp.eq.s32.totalorder %s43, 3
      %p130 = por %p128, %p129
      %p132 = scmp.ne.s32.totalorder %s115, %s131
      %p133 = scmp.eq.s32.totalorder %s43, 0
      %p134 = por %p132, %p133
      %s135 = ssub.s32 %s45, %s52
      %p136 = scmp.eq.s32.totalorder %s135, 0
      %s138 = sadd.s32 %s137, 1
      %s139 = scalar_select %p136, %s137, %s138
      %p142 = pneg %p136
      %p143 = scmp.eq.s32.totalorder %s37, 3
      %p144 = por %p142, %p143
      %p145 = scmp.ne.s32.totalorder %s137, %s140
      %p146 = scmp.eq.s32.totalorder %s37, 0
      %p147 = por %p145, %p146
      %p148 = scmp.ne.s32.totalorder %s137, %s140
      %p149 = scmp.eq.s32.totalorder %s42, 3
      %p150 = por %p148, %p149
      %p151 = scmp.ne.s32.totalorder %s140, %s141
      %p152 = scmp.eq.s32.totalorder %s42, 0
      %p153 = por %p151, %p152
      %p154 = scmp.ne.s32.totalorder %s140, %s141
      %p155 = scmp.eq.s32.totalorder %s43, 3
      %p156 = por %p154, %p155
      %p158 = scmp.ne.s32.totalorder %s141, %s157
      %p159 = scmp.eq.s32.totalorder %s43, 0
      %p160 = por %p158, %p159
      %s161 = ssub.s32 %s45, %s52
      %p162 = scmp.eq.s32.totalorder %s161, 0
      %s164 = sadd.s32 %s163, 1
      %s165 = scalar_select %p162, %s163, %s164
      %p168 = pneg %p162
      %p169 = scmp.eq.s32.totalorder %s37, 3
      %p170 = por %p168, %p169
      %p171 = scmp.ne.s32.totalorder %s163, %s166
      %p172 = scmp.eq.s32.totalorder %s37, 0
      %p173 = por %p171, %p172
      %p174 = scmp.ne.s32.totalorder %s163, %s166
      %p175 = scmp.eq.s32.totalorder %s42, 3
      %p176 = por %p174, %p175
      %p177 = scmp.ne.s32.totalorder %s166, %s167
      %p178 = scmp.eq.s32.totalorder %s42, 0
      %p179 = por %p177, %p178
      %p180 = scmp.ne.s32.totalorder %s166, %s167
      %p181 = scmp.eq.s32.totalorder %s43, 3
      %p182 = por %p180, %p181
      %p184 = scmp.ne.s32.totalorder %s167, %s183
      %p185 = scmp.eq.s32.totalorder %s43, 0
      %p186 = por %p184, %p185
      %s187 = ssub.s32 %s45, %s52
      %p188 = scmp.eq.s32.totalorder %s187, 0
      %s190 = sadd.s32 %s189, 1
      %s191 = scalar_select %p188, %s189, %s190
      %p194 = pneg %p188
      %p195 = scmp.eq.s32.totalorder %s37, 3
      %p196 = por %p194, %p195
      %p197 = scmp.ne.s32.totalorder %s189, %s192
      %p198 = scmp.eq.s32.totalorder %s37, 0
      %p199 = por %p197, %p198
      %p200 = scmp.ne.s32.totalorder %s189, %s192
      %p201 = scmp.eq.s32.totalorder %s42, 3
      %p202 = por %p200, %p201
      %p203 = scmp.ne.s32.totalorder %s192, %s193
      %p204 = scmp.eq.s32.totalorder %s42, 0
      %p205 = por %p203, %p204
      %p206 = scmp.ne.s32.totalorder %s192, %s193
      %p207 = scmp.eq.s32.totalorder %s43, 3
      %p208 = por %p206, %p207
      %p210 = scmp.ne.s32.totalorder %s193, %s209
      %p211 = scmp.eq.s32.totalorder %s43, 0
      %p212 = por %p210, %p211
      %s213 = ssub.s32 %s45, %s52
      %p214 = scmp.eq.s32.totalorder %s213, 0
      %s216 = sadd.s32 %s215, 1
      %s217 = scalar_select %p214, %s215, %s216
      %p220 = pneg %p214
      %p221 = scmp.eq.s32.totalorder %s37, 3
      %p222 = por %p220, %p221
      %p223 = scmp.ne.s32.totalorder %s215, %s218
      %p224 = scmp.eq.s32.totalorder %s37, 0
      %p225 = por %p223, %p224
      %p226 = scmp.ne.s32.totalorder %s215, %s218
      %p227 = scmp.eq.s32.totalorder %s42, 3
      %p228 = por %p226, %p227
      %p229 = scmp.ne.s32.totalorder %s218, %s219
      %p230 = scmp.eq.s32.totalorder %s42, 0
      %p231 = por %p229, %p230
      %p232 = scmp.ne.s32.totalorder %s218, %s219
      %p233 = scmp.eq.s32.totalorder %s43, 3
      %p234 = por %p232, %p233
      %p236 = scmp.ne.s32.totalorder %s219, %s235
      %p237 = scmp.eq.s32.totalorder %s43, 0
      %p238 = por %p236, %p237
      %s239 = ssub.s32 %s45, %s52
      %p240 = scmp.eq.s32.totalorder %s239, 0
      %s242 = sadd.s32 %s241, 1
      %s243 = scalar_select %p240, %s241, %s242
      %p246 = pneg %p240
      %p247 = scmp.eq.s32.totalorder %s37, 3
      %p248 = por %p246, %p247
      %p249 = scmp.ne.s32.totalorder %s241, %s244
      %p250 = scmp.eq.s32.totalorder %s37, 0
      %p251 = por %p249, %p250
      %p252 = scmp.ne.s32.totalorder %s241, %s244
      %p253 = scmp.eq.s32.totalorder %s42, 3
      %p254 = por %p252, %p253
      %p255 = scmp.ne.s32.totalorder %s244, %s245
      %p256 = scmp.eq.s32.totalorder %s42, 0
      %p257 = por %p255, %p256
      %p258 = scmp.ne.s32.totalorder %s244, %s245
      %p259 = scmp.eq.s32.totalorder %s43, 3
      %p260 = por %p258, %p259
      %p262 = scmp.ne.s32.totalorder %s245, %s261
      %p263 = scmp.eq.s32.totalorder %s43, 0
      %p264 = por %p262, %p263
      %s265 = ssub.s32 %s45, %s52
      %p266 = scmp.eq.s32.totalorder %s265, 0
      %s268 = sadd.s32 %s267, 1
      %s269 = scalar_select %p266, %s267, %s268
      %p272 = pneg %p266
      %p273 = scmp.eq.s32.totalorder %s37, 3
      %p274 = por %p272, %p273
      %p275 = scmp.ne.s32.totalorder %s267, %s270
      %p276 = scmp.eq.s32.totalorder %s37, 0
      %p277 = por %p275, %p276
      %p278 = scmp.ne.s32.totalorder %s267, %s270
      %p279 = scmp.eq.s32.totalorder %s42, 3
      %p280 = por %p278, %p279
      %p281 = scmp.ne.s32.totalorder %s270, %s271
      %p282 = scmp.eq.s32.totalorder %s42, 0
      %p283 = por %p281, %p282
      %p284 = scmp.ne.s32.totalorder %s270, %s271
      %p285 = scmp.eq.s32.totalorder %s43, 3
      %p286 = por %p284, %p285
      %p288 = scmp.ne.s32.totalorder %s271, %s287
      %p289 = scmp.eq.s32.totalorder %s43, 0
      %p290 = por %p288, %p289
      %s291 = ssub.s32 %s45, %s52
      %p292 = scmp.eq.s32.totalorder %s291, 0
      %s294 = sadd.s32 %s293, 1
      %s295 = scalar_select %p292, %s293, %s294
      %p298 = pneg %p292
      %p299 = scmp.eq.s32.totalorder %s37, 3
      %p300 = por %p298, %p299
      %p301 = scmp.ne.s32.totalorder %s293, %s296
      %p302 = scmp.eq.s32.totalorder %s37, 0
      %p303 = por %p301, %p302
      %p304 = scmp.ne.s32.totalorder %s293, %s296
      %p305 = scmp.eq.s32.totalorder %s42, 3
      %p306 = por %p304, %p305
      %p307 = scmp.ne.s32.totalorder %s296, %s297
      %p308 = scmp.eq.s32.totalorder %s42, 0
      %p309 = por %p307, %p308
      %p310 = scmp.ne.s32.totalorder %s296, %s297
      %p311 = scmp.eq.s32.totalorder %s43, 3
      %p312 = por %p310, %p311
      %p314 = scmp.ne.s32.totalorder %s297, %s313
      %p315 = scmp.eq.s32.totalorder %s43, 0
      %p316 = por %p314, %p315
      %s317 = ssub.s32 %s45, %s52
      %p318 = scmp.eq.s32.totalorder %s317, 0
      %s320 = sadd.s32 %s319, 1
      %s321 = scalar_select %p318, %s319, %s320
      %p324 = pneg %p318
      %p325 = scmp.eq.s32.totalorder %s37, 3
      %p326 = por %p324, %p325
      %p327 = scmp.ne.s32.totalorder %s319, %s322
      %p328 = scmp.eq.s32.totalorder %s37, 0
      %p329 = por %p327, %p328
      %p330 = scmp.ne.s32.totalorder %s319, %s322
      %p331 = scmp.eq.s32.totalorder %s42, 3
      %p332 = por %p330, %p331
      %p333 = scmp.ne.s32.totalorder %s322, %s323
      %p334 = scmp.eq.s32.totalorder %s42, 0
      %p335 = por %p333, %p334
      %p336 = scmp.ne.s32.totalorder %s322, %s323
      %p337 = scmp.eq.s32.totalorder %s43, 3
      %p338 = por %p336, %p337
      %p340 = scmp.ne.s32.totalorder %s323, %s339
      %p341 = scmp.eq.s32.totalorder %s43, 0
      %p342 = por %p340, %p341
      %s343 = ssub.s32 %s45, %s52
      %p344 = scmp.eq.s32.totalorder %s343, 0
      %s346 = sadd.s32 %s345, 1
      %s347 = scalar_select %p344, %s345, %s346
      %p350 = pneg %p344
      %p351 = scmp.eq.s32.totalorder %s37, 3
      %p352 = por %p350, %p351
      %p353 = scmp.ne.s32.totalorder %s345, %s348
      %p354 = scmp.eq.s32.totalorder %s37, 0
      %p355 = por %p353, %p354
      %p356 = scmp.ne.s32.totalorder %s345, %s348
      %p357 = scmp.eq.s32.totalorder %s42, 3
      %p358 = por %p356, %p357
      %p359 = scmp.ne.s32.totalorder %s348, %s349
      %p360 = scmp.eq.s32.totalorder %s42, 0
      %p361 = por %p359, %p360
      %p362 = scmp.ne.s32.totalorder %s348, %s349
      %p363 = scmp.eq.s32.totalorder %s43, 3
      %p364 = por %p362, %p363
      %p366 = scmp.ne.s32.totalorder %s349, %s365
      %p367 = scmp.eq.s32.totalorder %s43, 0
      %p368 = por %p366, %p367
      %s369 = ssub.s32 %s45, %s52
      %p370 = scmp.eq.s32.totalorder %s369, 0
      %s372 = sadd.s32 %s371, 1
      %s373 = scalar_select %p370, %s371, %s372
      %p376 = pneg %p370
      %p377 = scmp.eq.s32.totalorder %s37, 3
      %p378 = por %p376, %p377
      %p379 = scmp.ne.s32.totalorder %s371, %s374
      %p380 = scmp.eq.s32.totalorder %s37, 0
      %p381 = por %p379, %p380
      %p382 = scmp.ne.s32.totalorder %s371, %s374
      %p383 = scmp.eq.s32.totalorder %s42, 3
      %p384 = por %p382, %p383
      %p385 = scmp.ne.s32.totalorder %s374, %s375
      %p386 = scmp.eq.s32.totalorder %s42, 0
      %p387 = por %p385, %p386
      %p388 = scmp.ne.s32.totalorder %s374, %s375
      %p389 = scmp.eq.s32.totalorder %s43, 3
      %p390 = por %p388, %p389
      %p392 = scmp.ne.s32.totalorder %s375, %s391
      %p393 = scmp.eq.s32.totalorder %s43, 0
      %p394 = por %p392, %p393
      %s395 = ssub.s32 %s44, %s56
      %p396 = scmp.eq.s32.totalorder %s395, 0
      %s398 = sadd.s32 %s397, 1
      %s399 = scalar_select %p396, %s397, %s398
      %p402 = pneg %p396
      %p403 = scmp.eq.s32.totalorder %s37, 3
      %p404 = por %p402, %p403
      %p405 = scmp.ne.s32.totalorder %s397, %s400
      %p406 = scmp.eq.s32.totalorder %s37, 0
      %p407 = por %p405, %p406
      %p408 = scmp.ne.s32.totalorder %s397, %s400
      %p409 = scmp.eq.s32.totalorder %s42, 3
      %p410 = por %p408, %p409
      %p411 = scmp.ne.s32.totalorder %s400, %s401
      %p412 = scmp.eq.s32.totalorder %s42, 0
      %p413 = por %p411, %p412
      %p414 = scmp.ne.s32.totalorder %s400, %s401
      %p415 = scmp.eq.s32.totalorder %s43, 3
      %p416 = por %p414, %p415
      %p418 = scmp.ne.s32.totalorder %s401, %s417
      %p419 = scmp.eq.s32.totalorder %s43, 0
      %p420 = por %p418, %p419
      %p421 = scmp.le.s32.totalorder 1, %s37
      %p422 = scmp.lt.s32.totalorder %s37, 5
      %p423 = pnand %p421, %p422
      %p424 = pneg %p423
      // Predicated region
      $region9: #{tpu_custom_call.1} parent=5 // pred_check
        _
      $region10: #{tpu_custom_call.1} parent=5 // pred_check_branch
        %426 = sbr.rel (%p423) target = $region12
      $region11: #{tpu_custom_call.1} parent=5 // pred_region
        %s427 = ssub.s32 %s37, 1
      $region12: #{tpu_custom_call.1} parent=5 // pred_fallthru
        _
      %p428 = scmp.lt.s32.totalorder %s37, 4
      // Predicated region
      $region13: #{tpu_custom_call.1} parent=5 // pred_check
        %p429 = pneg %p428
      $region14: #{tpu_custom_call.1} parent=5 // pred_check_branch
        %431 = sbr.rel (%p429) target = $region16
      $region15: #{tpu_custom_call.1} parent=5 // pred_region
        // Predicated region
        $region17: #{tpu_custom_call.1} parent=15 // pred_check
          %p432 = pneg %p69
        $region18: #{tpu_custom_call.1} parent=15 // pred_check_branch
          %434 = sbr.rel (%p432) target = $region20
        $region19: #{tpu_custom_call.1} parent=15 // pred_region
          %s435 = sand.u32 %s59, 1
          %s436 = scalar_lea.sflag [#allocation4], %s435
          %s437 = sand.u32 %s59, 1
          %s438 = smul.addr %s437, 16
          %s439 = scalar_lea.vmem [#allocation3], %s438
          %441 = vsyncadd %s436, 0
          %s442 = smul.addr %s44, 2
          %s443 = smul.addr %s442, 8
          %s444 = scalar_lea.hbm %s0, %s443
          %s445 = sshll.u32 %s444, 4
          %s446 = int_to_ptr.hbm [resolvable:$true] %s445
          %s447 = sshll.u32 %s439, 4
          %s448 = int_to_ptr.vmem [resolvable:$true] %s447
          %453 = dma.hbm_to_vmem [thread:$0]  %s446, 256, %s448, %s436, 128, 128, 8
        $region20: #{tpu_custom_call.1} parent=15 // pred_fallthru
          _
        // Predicated region
        $region21: #{tpu_custom_call.1} parent=15 // pred_check
          %p454 = pneg %p95
        $region22: #{tpu_custom_call.1} parent=15 // pred_check_branch
          %456 = sbr.rel (%p454) target = $region24
        $region23: #{tpu_custom_call.1} parent=15 // pred_region
          %s457 = sand.u32 %s37, 1
          %s458 = scalar_lea.sflag [#allocation7], %s457
          %s459 = sand.u32 %s85, 1
          %s460 = smul.addr %s459, 384
          %s461 = scalar_lea.vmem [#allocation6], %s460
          %463 = vsyncadd %s458, 0
          %s464 = smul.addr %s45, 48
          %s465 = smul.addr %s464, 8
          %s466 = scalar_lea.hbm %s1, %s465
          %s467 = sshll.u32 %s466, 4
          %s468 = int_to_ptr.hbm [resolvable:$true] %s467
          %s469 = sshll.u32 %s461, 4
          %s470 = int_to_ptr.vmem [resolvable:$true] %s469
          %475 = dma.hbm_to_vmem [thread:$0]  %s468, 6144, %s470, %s458, 384, 384, 24
        $region24: #{tpu_custom_call.1} parent=15 // pred_fallthru
          _
        // Predicated region
        $region25: #{tpu_custom_call.1} parent=15 // pred_check
          %p476 = pneg %p121
        $region26: #{tpu_custom_call.1} parent=15 // pred_check_branch
          %478 = sbr.rel (%p476) target = $region28
        $region27: #{tpu_custom_call.1} parent=15 // pred_region
          %s479 = sand.u32 %s37, 1
          %s480 = scalar_lea.sflag [#allocation7], %s479
          %s481 = sand.u32 %s111, 1
          %s482 = smul.addr %s481, 3
          %s483 = scalar_lea.vmem [#allocation8], %s482
          %485 = vsyncadd %s480, 0
          %s486 = smul.addr %s45, 3
          %s487 = scalar_lea.hbm %s2, %s486
          %s489 = sshll.u32 %s487, 4
          %s490 = int_to_ptr.hbm [resolvable:$true] %s489
          %s491 = sshll.u32 %s483, 4
          %s492 = int_to_ptr.vmem [resolvable:$true] %s491
          %494 = dma.hbm_to_vmem [thread:$0]  %s490, 48, %s492, %s480
        $region28: #{tpu_custom_call.1} parent=15 // pred_fallthru
          _
        // Predicated region
        $region29: #{tpu_custom_call.1} parent=15 // pred_check
          %p495 = pneg %p147
        $region30: #{tpu_custom_call.1} parent=15 // pred_check_branch
          %497 = sbr.rel (%p495) target = $region32
        $region31: #{tpu_custom_call.1} parent=15 // pred_region
          %s498 = sand.u32 %s37, 1
          %s499 = scalar_lea.sflag [#allocation10], %s498
          %s500 = sand.u32 %s137, 1
          %s501 = smul.addr %s500, 128
          %s502 = scalar_lea.vmem [#allocation9], %s501
          %504 = vsyncadd %s499, 0
          %s505 = smul.addr %s45, 16
          %s506 = smul.addr %s505, 8
          %s507 = scalar_lea.hbm %s3, %s506
          %s508 = sshll.u32 %s507, 4
          %s509 = int_to_ptr.hbm [resolvable:$true] %s508
          %s510 = sshll.u32 %s502, 4
          %s511 = int_to_ptr.vmem [resolvable:$true] %s510
          %516 = dma.hbm_to_vmem [thread:$0]  %s509, 2048, %s511, %s499, 128, 128, 8
        $region32: #{tpu_custom_call.1} parent=15 // pred_fallthru
          _
        // Predicated region
        $region33: #{tpu_custom_call.1} parent=15 // pred_check
          %p517 = pneg %p173
        $region34: #{tpu_custom_call.1} parent=15 // pred_check_branch
          %519 = sbr.rel (%p517) target = $region36
        $region35: #{tpu_custom_call.1} parent=15 // pred_region
          %p520 = scmp.lt.s32.totalorder %s45, 1
          %s521 = scalar_select %p520, %s45, 1
          %s522 = scalar_lea.vmem %s4, %s521
        $region36: #{tpu_custom_call.1} parent=15 // pred_fallthru
          _
        // Predicated region
        $region37: #{tpu_custom_call.1} parent=15 // pred_check
          %p523 = pneg %p199
        $region38: #{tpu_custom_call.1} parent=15 // pred_check_branch
          %525 = sbr.rel (%p523) target = $region40
        $region39: #{tpu_custom_call.1} parent=15 // pred_region
          %s526 = sand.u32 %s37, 1
          %s527 = scalar_lea.sflag [#allocation10], %s526
          %s528 = sand.u32 %s189, 1
          %s529 = scalar_lea.vmem [#allocation11], %s528
          %531 = vsyncadd %s527, 0
          %s532 = scalar_lea.hbm %s5, %s45
          %s534 = sshll.u32 %s532, 4
          %s535 = int_to_ptr.hbm [resolvable:$true] %s534
          %s536 = sshll.u32 %s529, 4
          %s537 = int_to_ptr.vmem [resolvable:$true] %s536
          %539 = dma.hbm_to_vmem [thread:$0]  %s535, 16, %s537, %s527
        $region40: #{tpu_custom_call.1} parent=15 // pred_fallthru
          _
        // Predicated region
        $region41: #{tpu_custom_call.1} parent=15 // pred_check
          %p540 = pneg %p225
        $region42: #{tpu_custom_call.1} parent=15 // pred_check_branch
          %542 = sbr.rel (%p540) target = $region44
        $region43: #{tpu_custom_call.1} parent=15 // pred_region
          %s543 = sand.u32 %s37, 1
          %s544 = scalar_lea.sflag [#allocation13], %s543
          %s545 = sand.u32 %s215, 1
          %s546 = scalar_lea.vmem [#allocation12], %s545
          %548 = vsyncadd %s544, 0
          %s549 = scalar_lea.hbm %s6, %s45
          %s551 = sshll.u32 %s549, 4
          %s552 = int_to_ptr.hbm [resolvable:$true] %s551
          %s553 = sshll.u32 %s546, 4
          %s554 = int_to_ptr.vmem [resolvable:$true] %s553
          %556 = dma.hbm_to_vmem [thread:$0]  %s552, 16, %s554, %s544
        $region44: #{tpu_custom_call.1} parent=15 // pred_fallthru
          _
        // Predicated region
        $region45: #{tpu_custom_call.1} parent=15 // pred_check
          %p557 = pneg %p251
        $region46: #{tpu_custom_call.1} parent=15 // pred_check_branch
          %559 = sbr.rel (%p557) target = $region48
        $region47: #{tpu_custom_call.1} parent=15 // pred_region
          %s560 = sand.u32 %s37, 1
          %s561 = scalar_lea.sflag [#allocation13], %s560
          %s562 = sand.u32 %s241, 1
          %s563 = smul.addr %s562, 256
          %s564 = scalar_lea.vmem [#allocation14], %s563
          %566 = vsyncadd %s561, 0
          %s567 = smul.addr %s45, 32
          %s568 = smul.addr %s567, 8
          %s569 = scalar_lea.hbm %s7, %s568
          %s570 = sshll.u32 %s569, 4
          %s571 = int_to_ptr.hbm [resolvable:$true] %s570
          %s572 = sshll.u32 %s564, 4
          %s573 = int_to_ptr.vmem [resolvable:$true] %s572
          %578 = dma.hbm_to_vmem [thread:$0]  %s571, 4096, %s573, %s561, 256, 256, 16
        $region48: #{tpu_custom_call.1} parent=15 // pred_fallthru
          _
        // Predicated region
        $region49: #{tpu_custom_call.1} parent=15 // pred_check
          %p579 = pneg %p277
        $region50: #{tpu_custom_call.1} parent=15 // pred_check_branch
          %581 = sbr.rel (%p579) target = $region52
        $region51: #{tpu_custom_call.1} parent=15 // pred_region
          %p582 = scmp.lt.s32.totalorder %s45, 1
          %s583 = scalar_select %p582, %s45, 1
          %s584 = smul.addr %s583, 2
          %s585 = scalar_lea.vmem %s8, %s584
        $region52: #{tpu_custom_call.1} parent=15 // pred_fallthru
          _
        // Predicated region
        $region53: #{tpu_custom_call.1} parent=15 // pred_check
          %p586 = pneg %p303
        $region54: #{tpu_custom_call.1} parent=15 // pred_check_branch
          %588 = sbr.rel (%p586) target = $region56
        $region55: #{tpu_custom_call.1} parent=15 // pred_region
          %s589 = sand.u32 %s37, 1
          %s590 = scalar_lea.sflag [#allocation16], %s589
          %s591 = sand.u32 %s293, 1
          %s592 = smul.addr %s591, 256
          %s593 = scalar_lea.vmem [#allocation15], %s592
          %595 = vsyncadd %s590, 0
          %s596 = smul.addr %s45, 32
          %s597 = smul.addr %s596, 8
          %s598 = scalar_lea.hbm %s9, %s597
          %s599 = sshll.u32 %s598, 4
          %s600 = int_to_ptr.hbm [resolvable:$true] %s599
          %s601 = sshll.u32 %s593, 4
          %s602 = int_to_ptr.vmem [resolvable:$true] %s601
          %607 = dma.hbm_to_vmem [thread:$0]  %s600, 4096, %s602, %s590, 128, 128, 8
        $region56: #{tpu_custom_call.1} parent=15 // pred_fallthru
          _
        // Predicated region
        $region57: #{tpu_custom_call.1} parent=15 // pred_check
          %p608 = pneg %p329
        $region58: #{tpu_custom_call.1} parent=15 // pred_check_branch
          %610 = sbr.rel (%p608) target = $region60
        $region59: #{tpu_custom_call.1} parent=15 // pred_region
          %p611 = scmp.lt.s32.totalorder %s45, 1
          %s612 = scalar_select %p611, %s45, 1
          %s613 = scalar_lea.vmem %s10, %s612
        $region60: #{tpu_custom_call.1} parent=15 // pred_fallthru
          _
        // Predicated region
        $region61: #{tpu_custom_call.1} parent=15 // pred_check
          %p614 = pneg %p355
        $region62: #{tpu_custom_call.1} parent=15 // pred_check_branch
          %616 = sbr.rel (%p614) target = $region64
        $region63: #{tpu_custom_call.1} parent=15 // pred_region
          %p617 = scmp.lt.s32.totalorder %s45, 1
          %s618 = scalar_select %p617, %s45, 1
          %s619 = scalar_lea.vmem %s11, %s618
        $region64: #{tpu_custom_call.1} parent=15 // pred_fallthru
          _
        // Predicated region
        $region65: #{tpu_custom_call.1} parent=15 // pred_check
          %p620 = pneg %p381
        $region66: #{tpu_custom_call.1} parent=15 // pred_check_branch
          %622 = sbr.rel (%p620) target = $region68
        $region67: #{tpu_custom_call.1} parent=15 // pred_region
          %s623 = sand.u32 %s37, 1
          %s624 = scalar_lea.sflag [#allocation16], %s623
          %s625 = sand.u32 %s371, 1
          %s626 = scalar_lea.vmem [#allocation17], %s625
          %628 = vsyncadd %s624, 0
          %s629 = scalar_lea.hbm %s12, %s45
          %s631 = sshll.u32 %s629, 4
          %s632 = int_to_ptr.hbm [resolvable:$true] %s631
          %s633 = sshll.u32 %s626, 4
          %s634 = int_to_ptr.vmem [resolvable:$true] %s633
          %636 = dma.hbm_to_vmem [thread:$0]  %s632, 16, %s634, %s624
        $region68: #{tpu_custom_call.1} parent=15 // pred_fallthru
          _
      $region16: #{tpu_custom_call.1} parent=5 // pred_fallthru
        _
      %p637 = scmp.le.s32.totalorder 1, %s37
      %p638 = scmp.lt.s32.totalorder %s37, 5
      %p639 = pnand %p637, %p638
      %p640 = pneg %p639
      // Predicated region
      $region69: #{tpu_custom_call.1} parent=5 // pred_check
        _
      $region70: #{tpu_custom_call.1} parent=5 // pred_check_branch
        %642 = sbr.rel (%p639) target = $region72
      $region71: #{tpu_custom_call.1} parent=5 // pred_region
        %s643 = ssub.s32 %s37, 1
        %s644 = sand.u32 %s62, 1
        %s645 = scalar_lea.sflag [#allocation4], %s644
        %s646 = sand.u32 %s62, 1
        %s647 = smul.addr %s646, 16
        %s648 = scalar_lea.vmem [#allocation3], %s647
        // Predicated region
        $region73: #{tpu_custom_call.1} parent=71 // pred_check
          %p649 = pneg %p75
        $region74: #{tpu_custom_call.1} parent=71 // pred_check_branch
          %651 = sbr.rel (%p649) target = $region76
        $region75: #{tpu_custom_call.1} parent=71 // pred_region
          %653 = dma.done %s645, 256
        $region76: #{tpu_custom_call.1} parent=71 // pred_fallthru
          _
        %s654 = sand.u32 %s42, 1
        %s655 = scalar_lea.sflag [#allocation7], %s654
        %s656 = sand.u32 %s88, 1
        %s657 = smul.addr %s656, 384
        %s658 = scalar_lea.vmem [#allocation6], %s657
        // Predicated region
        $region77: #{tpu_custom_call.1} parent=71 // pred_check
          %p659 = pneg %p101
        $region78: #{tpu_custom_call.1} parent=71 // pred_check_branch
          %661 = sbr.rel (%p659) target = $region80
        $region79: #{tpu_custom_call.1} parent=71 // pred_region
          %663 = dma.done %s655, 6144
        $region80: #{tpu_custom_call.1} parent=71 // pred_fallthru
          _
        %s664 = sand.u32 %s42, 1
        %s665 = scalar_lea.sflag [#allocation7], %s664
        %s666 = sand.u32 %s114, 1
        %s667 = smul.addr %s666, 3
        %s668 = scalar_lea.vmem [#allocation8], %s667
        // Predicated region
        $region81: #{tpu_custom_call.1} parent=71 // pred_check
          %p669 = pneg %p127
        $region82: #{tpu_custom_call.1} parent=71 // pred_check_branch
          %671 = sbr.rel (%p669) target = $region84
        $region83: #{tpu_custom_call.1} parent=71 // pred_region
          %673 = dma.done %s665, 48
        $region84: #{tpu_custom_call.1} parent=71 // pred_fallthru
          _
        %s674 = sand.u32 %s42, 1
        %s675 = scalar_lea.sflag [#allocation10], %s674
        %s676 = sand.u32 %s140, 1
        %s677 = smul.addr %s676, 128
        %s678 = scalar_lea.vmem [#allocation9], %s677
        // Predicated region
        $region85: #{tpu_custom_call.1} parent=71 // pred_check
          %p679 = pneg %p153
        $region86: #{tpu_custom_call.1} parent=71 // pred_check_branch
          %681 = sbr.rel (%p679) target = $region88
        $region87: #{tpu_custom_call.1} parent=71 // pred_region
          %683 = dma.done %s675, 2048
        $region88: #{tpu_custom_call.1} parent=71 // pred_fallthru
          _
        %s684 = sand.u32 %s42, 1
        %s685 = scalar_lea.sflag [#allocation10], %s684
        %s686 = sand.u32 %s192, 1
        %s687 = scalar_lea.vmem [#allocation11], %s686
        // Predicated region
        $region89: #{tpu_custom_call.1} parent=71 // pred_check
          %p688 = pneg %p205
        $region90: #{tpu_custom_call.1} parent=71 // pred_check_branch
          %690 = sbr.rel (%p688) target = $region92
        $region91: #{tpu_custom_call.1} parent=71 // pred_region
          %692 = dma.done %s685, 16
        $region92: #{tpu_custom_call.1} parent=71 // pred_fallthru
          _
        %s693 = sand.u32 %s42, 1
        %s694 = scalar_lea.sflag [#allocation13], %s693
        %s695 = sand.u32 %s218, 1
        %s696 = scalar_lea.vmem [#allocation12], %s695
        // Predicated region
        $region93: #{tpu_custom_call.1} parent=71 // pred_check
          %p697 = pneg %p231
        $region94: #{tpu_custom_call.1} parent=71 // pred_check_branch
          %699 = sbr.rel (%p697) target = $region96
        $region95: #{tpu_custom_call.1} parent=71 // pred_region
          %701 = dma.done %s694, 16
        $region96: #{tpu_custom_call.1} parent=71 // pred_fallthru
          _
        %s702 = sand.u32 %s42, 1
        %s703 = scalar_lea.sflag [#allocation13], %s702
        %s704 = sand.u32 %s244, 1
        %s705 = smul.addr %s704, 256
        %s706 = scalar_lea.vmem [#allocation14], %s705
        // Predicated region
        $region97: #{tpu_custom_call.1} parent=71 // pred_check
          %p707 = pneg %p257
        $region98: #{tpu_custom_call.1} parent=71 // pred_check_branch
          %709 = sbr.rel (%p707) target = $region100
        $region99: #{tpu_custom_call.1} parent=71 // pred_region
          %711 = dma.done %s703, 4096
        $region100: #{tpu_custom_call.1} parent=71 // pred_fallthru
          _
        %s712 = sand.u32 %s42, 1
        %s713 = scalar_lea.sflag [#allocation16], %s712
        %s714 = sand.u32 %s296, 1
        %s715 = smul.addr %s714, 256
        %s716 = scalar_lea.vmem [#allocation15], %s715
        // Predicated region
        $region101: #{tpu_custom_call.1} parent=71 // pred_check
          %p717 = pneg %p309
        $region102: #{tpu_custom_call.1} parent=71 // pred_check_branch
          %719 = sbr.rel (%p717) target = $region104
        $region103: #{tpu_custom_call.1} parent=71 // pred_region
          %721 = dma.done %s713, 4096
        $region104: #{tpu_custom_call.1} parent=71 // pred_fallthru
          _
        %s722 = sand.u32 %s42, 1
        %s723 = scalar_lea.sflag [#allocation16], %s722
        %s724 = sand.u32 %s374, 1
        %s725 = scalar_lea.vmem [#allocation17], %s724
        // Predicated region
        $region105: #{tpu_custom_call.1} parent=71 // pred_check
          %p726 = pneg %p387
        $region106: #{tpu_custom_call.1} parent=71 // pred_check_branch
          %728 = sbr.rel (%p726) target = $region108
        $region107: #{tpu_custom_call.1} parent=71 // pred_region
          %730 = dma.done %s723, 16
        $region108: #{tpu_custom_call.1} parent=71 // pred_fallthru
          _
        %s731 = sand.u32 %s62, 1
        %s732 = scalar_lea.sflag [#allocation4], %s731
        %s733 = sand.u32 %s62, 1
        %s734 = smul.addr %s733, 16
        %s735 = scalar_lea.vmem [#allocation3], %s734
        %p736 = pneg %p75
        %p737 = pneg %p72
        %s738 = sand.u32 %s42, 1
        %s739 = scalar_lea.sflag [#allocation7], %s738
        %s740 = sand.u32 %s88, 1
        %s741 = smul.addr %s740, 384
        %s742 = scalar_lea.vmem [#allocation6], %s741
        %p743 = pneg %p101
        %p744 = pneg %p98
        %s745 = sand.u32 %s42, 1
        %s746 = scalar_lea.sflag [#allocation7], %s745
        %s747 = sand.u32 %s114, 1
        %s748 = smul.addr %s747, 3
        %s749 = scalar_lea.vmem [#allocation8], %s748
        %p750 = pneg %p127
        %p751 = pneg %p124
        %s752 = sand.u32 %s42, 1
        %s753 = scalar_lea.sflag [#allocation10], %s752
        %s754 = sand.u32 %s140, 1
        %s755 = smul.addr %s754, 128
        %s756 = scalar_lea.vmem [#allocation9], %s755
        %p757 = pneg %p153
        %p758 = pneg %p150
        %p759 = scmp.lt.s32.totalorder %s47, 1
        %s760 = scalar_select %p759, %s47, 1
        %s761 = scalar_lea.vmem %s4, %s760
        %p762 = pneg %p179
        %p763 = pneg %p176
        %s764 = sand.u32 %s42, 1
        %s765 = scalar_lea.sflag [#allocation10], %s764
        %s766 = sand.u32 %s192, 1
        %s767 = scalar_lea.vmem [#allocation11], %s766
        %p768 = pneg %p205
        %p769 = pneg %p202
        %s770 = sand.u32 %s42, 1
        %s771 = scalar_lea.sflag [#allocation13], %s770
        %s772 = sand.u32 %s218, 1
        %s773 = scalar_lea.vmem [#allocation12], %s772
        %p774 = pneg %p231
        %p775 = pneg %p228
        %s776 = sand.u32 %s42, 1
        %s777 = scalar_lea.sflag [#allocation13], %s776
        %s778 = sand.u32 %s244, 1
        %s779 = smul.addr %s778, 256
        %s780 = scalar_lea.vmem [#allocation14], %s779
        %p781 = pneg %p257
        %p782 = pneg %p254
        %p783 = scmp.lt.s32.totalorder %s47, 1
        %s784 = scalar_select %p783, %s47, 1
        %s785 = smul.addr %s784, 2
        %s786 = scalar_lea.vmem %s8, %s785
        %p787 = pneg %p283
        %p788 = pneg %p280
        %s789 = sand.u32 %s42, 1
        %s790 = scalar_lea.sflag [#allocation16], %s789
        %s791 = sand.u32 %s296, 1
        %s792 = smul.addr %s791, 256
        %s793 = scalar_lea.vmem [#allocation15], %s792
        %p794 = pneg %p309
        %p795 = pneg %p306
        %p796 = scmp.lt.s32.totalorder %s47, 1
        %s797 = scalar_select %p796, %s47, 1
        %s798 = scalar_lea.vmem %s10, %s797
        %p799 = pneg %p335
        %p800 = pneg %p332
        %p801 = scmp.lt.s32.totalorder %s47, 1
        %s802 = scalar_select %p801, %s47, 1
        %s803 = scalar_lea.vmem %s11, %s802
        %p804 = pneg %p361
        %p805 = pneg %p358
        %s806 = sand.u32 %s42, 1
        %s807 = scalar_lea.sflag [#allocation16], %s806
        %s808 = sand.u32 %s374, 1
        %s809 = scalar_lea.vmem [#allocation17], %s808
        %p810 = pneg %p387
        %p811 = pneg %p384
        %p812 = pneg %p413
        %p813 = pneg %p410
        %s814 = sand.u32 %s400, 1
        %s815 = scalar_lea.sflag [#allocation5], %s814
        %s816 = sand.u32 %s400, 1
        %s817 = smul.addr %s816, 16
        %s818 = scalar_lea.vmem [#allocation18], %s817
        %p819 = scmp.lt.s32.totalorder %s47, 1
        %s820 = scalar_select %p819, %s47, 1
        %s821 = scalar_lea.vmem %s4, %s820
        %p822 = scmp.lt.s32.totalorder %s47, 1
        %s823 = scalar_select %p822, %s47, 1
        %s824 = smul.addr %s823, 2
        %s825 = scalar_lea.vmem %s8, %s824
        %p826 = scmp.lt.s32.totalorder %s47, 1
        %s827 = scalar_select %p826, %s47, 1
        %s828 = scalar_lea.vmem %s10, %s827
        %p829 = scmp.lt.s32.totalorder %s47, 1
        %s830 = scalar_select %p829, %s47, 1
        %s831 = scalar_lea.vmem %s11, %s830
        %p832 = scmp.eq.s32.totalorder %s47, 0
        // Predicated region
        $region109: #{tpu_custom_call.1} parent=71 // pred_check
          %p833 = pneg %p832
        $region110: #{tpu_custom_call.1} parent=71 // pred_check_branch
          %835 = sbr.rel (%p833) target = $region112
        $region111: #{tpu_custom_call.1} parent=71 // pred_region
          %v836 = vld [vmem:[%s648] sm:$0xff]
          %v837 = vld [vmem:[%s648 + $0x8] sm:$0xff]
          %838 = vst [vmem:[#allocation2] sm:$0xff] %v836
          %839 = vst [vmem:[#allocation2 + $0x8] sm:$0xff] %v837
        $region112: #{tpu_custom_call.1} parent=71 // pred_fallthru
          _
        %v840 = vld [vmem:[#allocation2] sm:$0xff]
        %v841 = vld [vmem:[#allocation2 + $0x8] sm:$0xff]
        %v842 = vld [vmem:[%s658] sm:$0xff]
        %v843 = vld [vmem:[%s658 + $0x8] sm:$0xff]
        %v844 = vld [vmem:[%s658 + $0x10] sm:$0xff]
        %v845 = vld [vmem:[%s658 + $0x18] sm:$0xff]
        %v846 = vld [vmem:[%s658 + $0x20] sm:$0xff]
        %v847 = vld [vmem:[%s658 + $0x28] sm:$0xff]
        %v848 = vld [vmem:[%s658 + $0x30] sm:$0xff]
        %v849 = vld [vmem:[%s658 + $0x38] sm:$0xff]
        %v850 = vld [vmem:[%s658 + $0x40] sm:$0xff]
        %v851 = vld [vmem:[%s658 + $0x48] sm:$0xff]
        %v852 = vld [vmem:[%s658 + $0x50] sm:$0xff]
        %v853 = vld [vmem:[%s658 + $0x58] sm:$0xff]
        %v854 = vld [vmem:[%s658 + $0x60] sm:$0xff]
        %v855 = vld [vmem:[%s658 + $0x68] sm:$0xff]
        %v856 = vld [vmem:[%s658 + $0x70] sm:$0xff]
        %v857 = vld [vmem:[%s658 + $0x78] sm:$0xff]
        %v858 = vld [vmem:[%s658 + $0x80] sm:$0xff]
        %v859 = vld [vmem:[%s658 + $0x88] sm:$0xff]
        %v860 = vld [vmem:[%s658 + $0x90] sm:$0xff]
        %v861 = vld [vmem:[%s658 + $0x98] sm:$0xff]
        %v862 = vld [vmem:[%s658 + $0xa0] sm:$0xff]
        %v863 = vld [vmem:[%s658 + $0xa8] sm:$0xff]
        %v864 = vld [vmem:[%s658 + $0xb0] sm:$0xff]
        %v865 = vld [vmem:[%s658 + $0xb8] sm:$0xff]
        %v866 = vld [vmem:[%s658 + $0xc0] sm:$0xff]
        %v867 = vld [vmem:[%s658 + $0xc8] sm:$0xff]
        %v868 = vld [vmem:[%s658 + $0xd0] sm:$0xff]
        %v869 = vld [vmem:[%s658 + $0xd8] sm:$0xff]
        %v870 = vld [vmem:[%s658 + $0xe0] sm:$0xff]
        %v871 = vld [vmem:[%s658 + $0xe8] sm:$0xff]
        %v872 = vld [vmem:[%s658 + $0xf0] sm:$0xff]
        %v873 = vld [vmem:[%s658 + $0xf8] sm:$0xff]
        %v874 = vld [vmem:[%s658 + $0x100] sm:$0xff]
        %v875 = vld [vmem:[%s658 + $0x108] sm:$0xff]
        %v876 = vld [vmem:[%s658 + $0x110] sm:$0xff]
        %v877 = vld [vmem:[%s658 + $0x118] sm:$0xff]
        %v878 = vld [vmem:[%s658 + $0x120] sm:$0xff]
        %v879 = vld [vmem:[%s658 + $0x128] sm:$0xff]
        %v880 = vld [vmem:[%s658 + $0x130] sm:$0xff]
        %v881 = vld [vmem:[%s658 + $0x138] sm:$0xff]
        %v882 = vld [vmem:[%s658 + $0x140] sm:$0xff]
        %v883 = vld [vmem:[%s658 + $0x148] sm:$0xff]
        %v884 = vld [vmem:[%s658 + $0x150] sm:$0xff]
        %v885 = vld [vmem:[%s658 + $0x158] sm:$0xff]
        %v886 = vld [vmem:[%s658 + $0x160] sm:$0xff]
        %v887 = vld [vmem:[%s658 + $0x168] sm:$0xff]
        %v888 = vld [vmem:[%s658 + $0x170] sm:$0xff]
        %v889 = vld [vmem:[%s658 + $0x178] sm:$0xff]
        %v890 = vld [vmem:[%s668] sm:$0x7]
        %v892 = vperm.slane %v890, 0
        %v893 = vperm.slane %v890, 1
        %v894 = vperm.slane %v890, 2
        %898 = vmatpush.msra.mxu0 %v887
        %899 = vmatpush.msra.mxu0 %v884
        %900 = vmatpush.msra.mxu0 %v881
        %901 = vmatpush.msra.mxu0 %v878
        %902 = vmatpush.msra.mxu0 %v875
        %903 = vmatpush.msra.mxu0 %v872
        %904 = vmatpush.msra.mxu0 %v869
        %905 = vmatpush.msra.mxu0 %v866
        %906 = vmatpush.msra.mxu0 %v863
        %907 = vmatpush.msra.mxu0 %v860
        %908 = vmatpush.msra.mxu0 %v857
        %909 = vmatpush.msra.mxu0 %v854
        %910 = vmatpush.msra.mxu0 %v851
        %911 = vmatpush.msra.mxu0 %v848
        %912 = vmatpush.msra.mxu0 %v845
        %913 = vmatpush.msra.mxu0 %v842
        %914 = vmatmul.f32.gmra.mxu0 %v840
        %v915 = vpop.f32.mrf.mxu0
        %v916 = vadd.f32 %v892, %v915
        %917 = vmatmul.f32.gmra.mxu0 %v841
        %v918 = vpop.f32.mrf.mxu0
        %v919 = vadd.f32 %v892, %v918
        %920 = vdwg.mxu0
        %921 = vmatpush.msra.mxu0 %v888
        %922 = vmatpush.msra.mxu0 %v885
        %923 = vmatpush.msra.mxu0 %v882
        %924 = vmatpush.msra.mxu0 %v879
        %925 = vmatpush.msra.mxu0 %v876
        %926 = vmatpush.msra.mxu0 %v873
        %927 = vmatpush.msra.mxu0 %v870
        %928 = vmatpush.msra.mxu0 %v867
        %929 = vmatpush.msra.mxu0 %v864
        %930 = vmatpush.msra.mxu0 %v861
        %931 = vmatpush.msra.mxu0 %v858
        %932 = vmatpush.msra.mxu0 %v855
        %933 = vmatpush.msra.mxu0 %v852
        %934 = vmatpush.msra.mxu0 %v849
        %935 = vmatpush.msra.mxu0 %v846
        %936 = vmatpush.msra.mxu0 %v843
        %937 = vmatmul.f32.gmra.mxu0 %v840
        %v938 = vpop.f32.mrf.mxu0
        %v939 = vadd.f32 %v893, %v938
        %940 = vmatmul.f32.gmra.mxu0 %v841
        %v941 = vpop.f32.mrf.mxu0
        %v942 = vadd.f32 %v893, %v941
        %943 = vdwg.mxu0
        %944 = vmatpush.msra.mxu0 %v889
        %945 = vmatpush.msra.mxu0 %v886
        %946 = vmatpush.msra.mxu0 %v883
        %947 = vmatpush.msra.mxu0 %v880
        %948 = vmatpush.msra.mxu0 %v877
        %949 = vmatpush.msra.mxu0 %v874
        %950 = vmatpush.msra.mxu0 %v871
        %951 = vmatpush.msra.mxu0 %v868
        %952 = vmatpush.msra.mxu0 %v865
        %953 = vmatpush.msra.mxu0 %v862
        %954 = vmatpush.msra.mxu0 %v859
        %955 = vmatpush.msra.mxu0 %v856
        %956 = vmatpush.msra.mxu0 %v853
        %957 = vmatpush.msra.mxu0 %v850
        %958 = vmatpush.msra.mxu0 %v847
        %959 = vmatpush.msra.mxu0 %v844
        %960 = vmatmul.f32.gmra.mxu0 %v840
        %v961 = vpop.f32.mrf.mxu0
        %v962 = vadd.f32 %v894, %v961
        %963 = vmatmul.f32.gmra.mxu0 %v841
        %v964 = vpop.f32.mrf.mxu0
        %v965 = vadd.f32 %v894, %v964
        %966 = vdwg.mxu0
        %969 = vrot.lane.b32.xlu0 %v916, 64
        %v970 = vpop.permute.xlu0 %969
        %971 = vrot.lane.b32.xlu0 %v919, 64
        %v972 = vpop.permute.xlu0 %971
        %975 = vrot.lane.b32.xlu0 %v939, 64
        %v976 = vpop.permute.xlu0 %975
        %977 = vrot.lane.b32.xlu0 %v942, 64
        %v978 = vpop.permute.xlu0 %977
        %981 = vrot.lane.b32.xlu0 %v962, 64
        %v982 = vpop.permute.xlu0 %981
        %983 = vrot.lane.b32.xlu0 %v965, 64
        %v984 = vpop.permute.xlu0 %983
        %vm987 = vcmask 523264
        %v988 = vsel %vm987, %v916, 0
        %v990 = vsel %vm987, %v919, 0
        %v992 = vsel %vm987, %v939, 0
        %v994 = vsel %vm987, %v942, 0
        %996 = vmatpush.xpose.msra.mxu0 0.0
        %997 = vmatpush.xpose.msra.mxu0 0.0
        %998 = vmatpush.xpose.msra.mxu0 0.0
        %999 = vmatpush.xpose.msra.mxu0 0.0
        %1000 = vmatpush.xpose.msra.mxu0 0.0
        %1001 = vmatpush.xpose.msra.mxu0 0.0
        %1002 = vmatpush.xpose.msra.mxu0 0.0
        %1003 = vmatpush.xpose.msra.mxu0 0.0
        %1004 = vmatpush.xpose.msra.mxu0 0.0
        %1005 = vmatpush.xpose.msra.mxu0 0.0
        %1006 = vmatpush.xpose.msra.mxu0 0.0
        %1007 = vmatpush.xpose.msra.mxu0 0.0
        %1008 = vmatpush.xpose.msra.mxu0 0.0
        %1009 = vmatpush.xpose.msra.mxu0 0.0
        %1010 = vmatpush.xpose.msra.mxu0 %v994
        %1011 = vmatpush.xpose.msra.mxu0 %v992
        %1012 = vmatmul.f32.gmra.mxu0 %v988
        %v1013 = vpop.f32.mrf.mxu0
        %v1014 = vadd.f32 0.0, %v1013
        %1015 = vmatmul.f32.gmra.mxu0 %v990
        %v1016 = vpop.f32.mrf.mxu0
        %v1017 = vadd.f32 0.0, %v1016
        %1018 = vdwg.mxu0
        %v1019 = vsel %vm987, %v970, 0
        %v1021 = vsel %vm987, %v972, 0
        %v1023 = vsel %vm987, %v976, 0
        %v1025 = vsel %vm987, %v978, 0
        %1027 = vmatpush.xpose.msra.mxu0 0.0
        %1028 = vmatpush.xpose.msra.mxu0 0.0
        %1029 = vmatpush.xpose.msra.mxu0 0.0
        %1030 = vmatpush.xpose.msra.mxu0 0.0
        %1031 = vmatpush.xpose.msra.mxu0 0.0
        %1032 = vmatpush.xpose.msra.mxu0 0.0
        %1033 = vmatpush.xpose.msra.mxu0 0.0
        %1034 = vmatpush.xpose.msra.mxu0 0.0
        %1035 = vmatpush.xpose.msra.mxu0 0.0
        %1036 = vmatpush.xpose.msra.mxu0 0.0
        %1037 = vmatpush.xpose.msra.mxu0 0.0
        %1038 = vmatpush.xpose.msra.mxu0 0.0
        %1039 = vmatpush.xpose.msra.mxu0 0.0
        %1040 = vmatpush.xpose.msra.mxu0 0.0
        %1041 = vmatpush.xpose.msra.mxu0 %v1025
        %1042 = vmatpush.xpose.msra.mxu0 %v1023
        %1043 = vmatmul.f32.gmra.mxu0 %v1019
        %v1044 = vpop.f32.mrf.mxu0
        %v1045 = vadd.f32 0.0, %v1044
        %1046 = vmatmul.f32.gmra.mxu0 %v1021
        %v1047 = vpop.f32.mrf.mxu0
        %v1048 = vadd.f32 0.0, %v1047
        %1049 = vdwg.mxu0
        %v1050 = vmul.f32 %v1014, 0.125
        %v1051 = vmul.f32 %v1017, 0.125
        %v1052 = vmul.f32 %v1045, 0.125
        %v1053 = vmul.f32 %v1048, 0.125
        %vm1054 = vcmask 130048
        %v1055 = vsel %vm1054, %v1050, -inf
        %1056 = vmax.xlane.f32.xlu0 %v1055
        %v1057 = vpop.xlane.xlu0 %1056
        %v1058 = vsel %vm1054, %v1051, -inf
        %1059 = vmax.xlane.f32.xlu0 %v1058
        %v1060 = vpop.xlane.xlu0 %1059
        %v1061 = vsel %vm1054, %v1052, -inf
        %1062 = vmax.xlane.f32.xlu0 %v1061
        %v1063 = vpop.xlane.xlu0 %1062
        %v1064 = vsel %vm1054, %v1053, -inf
        %1065 = vmax.xlane.f32.xlu0 %v1064
        %v1066 = vpop.xlane.xlu0 %1065
        %v1067 = vsub.f32 %v1050, %v1057
        %v1068 = vsub.f32 %v1051, %v1060
        %v1069 = vsub.f32 %v1052, %v1063
        %v1070 = vsub.f32 %v1053, %v1066
        %v1071 = vmul.f32 %v1067, 1.442695
        %v1072 = vpow.pop %v1071
        %v1073 = vmul.f32 %v1068, 1.442695
        %v1074 = vpow.pop %v1073
        %v1075 = vmul.f32 %v1069, 1.442695
        %v1076 = vpow.pop %v1075
        %v1077 = vmul.f32 %v1070, 1.442695
        %v1078 = vpow.pop %v1077
        %v1079 = vsel %vm1054, %v1072, 0.0
        %1080 = vadd.xlane.f32.xlu0 %v1079
        %v1081 = vpop.xlane.xlu0 %1080
        %v1082 = vsel %vm1054, %v1074, 0.0
        %1083 = vadd.xlane.f32.xlu0 %v1082
        %v1084 = vpop.xlane.xlu0 %1083
        %v1085 = vsel %vm1054, %v1076, 0.0
        %1086 = vadd.xlane.f32.xlu0 %v1085
        %v1087 = vpop.xlane.xlu0 %1086
        %v1088 = vsel %vm1054, %v1078, 0.0
        %1089 = vadd.xlane.f32.xlu0 %v1088
        %v1090 = vpop.xlane.xlu0 %1089
        %v1091 = vrcp.pop %v1081
        %v1092 = vrcp.pop %v1084
        %v1093 = vrcp.pop %v1087
        %v1094 = vrcp.pop %v1090
        %v1095 = vmul.f32 %v1072, %v1091
        %v1096 = vmul.f32 %v1074, %v1092
        %v1097 = vmul.f32 %v1076, %v1093
        %v1098 = vmul.f32 %v1078, %v1094
        %v1100 = vsel %vm1054, %v1095, 0
        %v1103 = vsel %vm1054, %v1096, 0
        %1105 = vmatpush.msra.mxu0 0.0
        %1106 = vmatpush.msra.mxu0 0.0
        %1107 = vmatpush.msra.mxu0 0.0
        %1108 = vmatpush.msra.mxu0 0.0
        %1109 = vmatpush.msra.mxu0 0.0
        %1110 = vmatpush.msra.mxu0 0.0
        %1111 = vmatpush.msra.mxu0 0.0
        %1112 = vmatpush.msra.mxu0 0.0
        %1113 = vmatpush.msra.mxu0 0.0
        %1114 = vmatpush.msra.mxu0 0.0
        %1115 = vmatpush.msra.mxu0 0.0
        %1116 = vmatpush.msra.mxu0 0.0
        %1117 = vmatpush.msra.mxu0 0.0
        %1118 = vmatpush.msra.mxu0 0.0
        %1119 = vmatpush.msra.mxu0 %v965
        %1120 = vmatpush.msra.mxu0 %v962
        %1121 = vmatmul.f32.gmra.mxu0 %v1100
        %v1122 = vpop.f32.mrf.mxu0
        %v1123 = vadd.f32 0.0, %v1122
        %1124 = vmatmul.f32.gmra.mxu0 %v1103
        %v1125 = vpop.f32.mrf.mxu0
        %v1126 = vadd.f32 0.0, %v1125
        %1127 = vdwg.mxu0
        %v1129 = vsel %vm1054, %v1097, 0
        %v1132 = vsel %vm1054, %v1098, 0
        %1134 = vmatpush.msra.mxu0 0.0
        %1135 = vmatpush.msra.mxu0 0.0
        %1136 = vmatpush.msra.mxu0 0.0
        %1137 = vmatpush.msra.mxu0 0.0
        %1138 = vmatpush.msra.mxu0 0.0
        %1139 = vmatpush.msra.mxu0 0.0
        %1140 = vmatpush.msra.mxu0 0.0
        %1141 = vmatpush.msra.mxu0 0.0
        %1142 = vmatpush.msra.mxu0 0.0
        %1143 = vmatpush.msra.mxu0 0.0
        %1144 = vmatpush.msra.mxu0 0.0
        %1145 = vmatpush.msra.mxu0 0.0
        %1146 = vmatpush.msra.mxu0 0.0
        %1147 = vmatpush.msra.mxu0 0.0
        %1148 = vmatpush.msra.mxu0 %v984
        %1149 = vmatpush.msra.mxu0 %v982
        %1150 = vmatmul.f32.gmra.mxu0 %v1129
        %v1151 = vpop.f32.mrf.mxu0
        %v1152 = vadd.f32 0.0, %v1151
        %1153 = vmatmul.f32.gmra.mxu0 %v1132
        %v1154 = vpop.f32.mrf.mxu0
        %v1155 = vadd.f32 0.0, %v1154
        %1156 = vdwg.mxu0
        %v1157 = vld [vmem:[%s678] sm:$0xff]
        %v1158 = vld [vmem:[%s678 + $0x8] sm:$0xff]
        %v1159 = vld [vmem:[%s678 + $0x10] sm:$0xff]
        %v1160 = vld [vmem:[%s678 + $0x18] sm:$0xff]
        %v1161 = vld [vmem:[%s678 + $0x20] sm:$0xff]
        %v1162 = vld [vmem:[%s678 + $0x28] sm:$0xff]
        %v1163 = vld [vmem:[%s678 + $0x30] sm:$0xff]
        %v1164 = vld [vmem:[%s678 + $0x38] sm:$0xff]
        %v1165 = vld [vmem:[%s678 + $0x40] sm:$0xff]
        %v1166 = vld [vmem:[%s678 + $0x48] sm:$0xff]
        %v1167 = vld [vmem:[%s678 + $0x50] sm:$0xff]
        %v1168 = vld [vmem:[%s678 + $0x58] sm:$0xff]
        %v1169 = vld [vmem:[%s678 + $0x60] sm:$0xff]
        %v1170 = vld [vmem:[%s678 + $0x68] sm:$0xff]
        %v1171 = vld [vmem:[%s678 + $0x70] sm:$0xff]
        %v1172 = vld [vmem:[%s678 + $0x78] sm:$0xff]
        %v1174 = vsel %vm987, %v1123, 0
        %v1177 = vsel %vm987, %v1126, 0
        %1179 = vmatpush.msra.mxu0 0.0
        %1180 = vmatpush.msra.mxu0 0.0
        %1181 = vmatpush.msra.mxu0 0.0
        %1182 = vmatpush.msra.mxu0 0.0
        %1183 = vmatpush.msra.mxu0 0.0
        %1184 = vmatpush.msra.mxu0 0.0
        %1185 = vmatpush.msra.mxu0 0.0
        %1186 = vmatpush.msra.mxu0 0.0
        %1187 = vmatpush.msra.mxu0 %v1164
        %1188 = vmatpush.msra.mxu0 %v1163
        %1189 = vmatpush.msra.mxu0 %v1162
        %1190 = vmatpush.msra.mxu0 %v1161
        %1191 = vmatpush.msra.mxu0 %v1160
        %1192 = vmatpush.msra.mxu0 %v1159
        %1193 = vmatpush.msra.mxu0 %v1158
        %1194 = vmatpush.msra.mxu0 %v1157
        %1195 = vmatmul.f32.gmra.mxu0 %v1174
        %v1196 = vpop.f32.mrf.mxu0
        %v1197 = vadd.f32 0.0, %v1196
        %1198 = vmatmul.f32.gmra.mxu0 %v1177
        %v1199 = vpop.f32.mrf.mxu0
        %v1200 = vadd.f32 0.0, %v1199
        %1201 = vdwg.mxu0
        %v1203 = vsel %vm987, %v1152, 0
        %v1206 = vsel %vm987, %v1155, 0
        %1208 = vmatpush.msra.mxu0 0.0
        %1209 = vmatpush.msra.mxu0 0.0
        %1210 = vmatpush.msra.mxu0 0.0
        %1211 = vmatpush.msra.mxu0 0.0
        %1212 = vmatpush.msra.mxu0 0.0
        %1213 = vmatpush.msra.mxu0 0.0
        %1214 = vmatpush.msra.mxu0 0.0
        %1215 = vmatpush.msra.mxu0 0.0
        %1216 = vmatpush.msra.mxu0 %v1172
        %1217 = vmatpush.msra.mxu0 %v1171
        %1218 = vmatpush.msra.mxu0 %v1170
        %1219 = vmatpush.msra.mxu0 %v1169
        %1220 = vmatpush.msra.mxu0 %v1168
        %1221 = vmatpush.msra.mxu0 %v1167
        %1222 = vmatpush.msra.mxu0 %v1166
        %1223 = vmatpush.msra.mxu0 %v1165
        %1224 = vmatmul.f32.gmra.mxu0 %v1203
        %v1225 = vpop.f32.mrf.mxu0
        %v1226 = vadd.f32 0.0, %v1225
        %1227 = vmatmul.f32.gmra.mxu0 %v1206
        %v1228 = vpop.f32.mrf.mxu0
        %v1229 = vadd.f32 0.0, %v1228
        %1230 = vdwg.mxu0
        %v1231 = vadd.f32 %v1197, %v1226
        %v1232 = vadd.f32 %v1200, %v1229
        %v1233 = vld [vmem:[%s821] sm:$0x1]
        %v1235 = vperm.slane %v1233, 0
        %v1237 = vadd.f32 %v1231, %v1235
        %v1238 = vadd.f32 %v1232, %v1235
        %v1239 = vadd.f32 %v840, %v1237
        %v1240 = vadd.f32 %v841, %v1238
        %v1241 = vld [vmem:[%s687] sm:$0x1]
        %v1242 = vld [vmem:[%s696] sm:$0x1]
        %1243 = vadd.xlane.f32.xlu0 %v1239
        %v1244 = vpop.xlane.xlu0 %1243
        %1245 = vadd.xlane.f32.xlu0 %v1240
        %v1246 = vpop.xlane.xlu0 %1245
        %v1247 = vrcp.pop 128.0
        %v1248 = vmul.f32 128.0, %v1247
        %v1249 = vsub.f32 1.0, %v1248
        %v1250 = vmul.f32 %v1247, %v1249
        %v1251 = vadd.f32 %v1247, %v1250
        %vm1252 = vweird.f32 %v1247
        %v1253 = vsel %vm1252, %v1247, %v1251
        %v1254 = vmul.f32 %v1244, %v1253
        %v1255 = vmul.f32 %v1246, %v1253
        %v1256 = vsub.f32 %v1239, %v1254
        %v1257 = vsub.f32 %v1240, %v1255
        %v1258 = vmul.f32 %v1256, %v1256
        %v1259 = vmul.f32 %v1257, %v1257
        %1260 = vadd.xlane.f32.xlu0 %v1258
        %v1261 = vpop.xlane.xlu0 %1260
        %1262 = vadd.xlane.f32.xlu0 %v1259
        %v1263 = vpop.xlane.xlu0 %1262
        %v1264 = vmul.f32 %v1261, %v1253
        %v1265 = vmul.f32 %v1263, %v1253
        %v1266 = vadd.f32 %v1264, 1e-05
        %v1267 = vadd.f32 %v1265, 1e-05
        %v1268 = vrsqrt.pop %v1266
        %v1269 = vmul.f32 %v1268, %v1266
        %v1270 = vmul.f32 %v1269, %v1268
        %v1271 = vmul.f32 0.5, %v1270
        %v1272 = vsub.f32 1.5, %v1271
        %v1273 = vmul.f32 %v1268, %v1272
        %vm1274 = vweird.f32 %v1266
        %vm1275 = vweird.f32 %v1268
        %vm1276 = vmor %vm1274, %vm1275
        %v1277 = vsel %vm1276, %v1268, %v1273
        %v1278 = vrsqrt.pop %v1267
        %v1279 = vmul.f32 %v1278, %v1267
        %v1280 = vmul.f32 %v1279, %v1278
        %v1281 = vmul.f32 0.5, %v1280
        %v1282 = vsub.f32 1.5, %v1281
        %v1283 = vmul.f32 %v1278, %v1282
        %vm1284 = vweird.f32 %v1267
        %vm1285 = vweird.f32 %v1278
        %vm1286 = vmor %vm1284, %vm1285
        %v1287 = vsel %vm1286, %v1278, %v1283
        %v1288 = vmul.f32 %v1256, %v1277
        %v1289 = vmul.f32 %v1257, %v1287
        %v1291 = vperm.slane %v1241, 0
        %v1293 = vmul.f32 %v1288, %v1291
        %v1294 = vmul.f32 %v1289, %v1291
        %v1296 = vperm.slane %v1242, 0
        %v1298 = vadd.f32 %v1293, %v1296
        %v1299 = vadd.f32 %v1294, %v1296
        %v1300 = vld [vmem:[%s706] sm:$0xff]
        %v1301 = vld [vmem:[%s706 + $0x8] sm:$0xff]
        %v1302 = vld [vmem:[%s706 + $0x10] sm:$0xff]
        %v1303 = vld [vmem:[%s706 + $0x18] sm:$0xff]
        %v1304 = vld [vmem:[%s706 + $0x20] sm:$0xff]
        %v1305 = vld [vmem:[%s706 + $0x28] sm:$0xff]
        %v1306 = vld [vmem:[%s706 + $0x30] sm:$0xff]
        %v1307 = vld [vmem:[%s706 + $0x38] sm:$0xff]
        %v1308 = vld [vmem:[%s706 + $0x40] sm:$0xff]
        %v1309 = vld [vmem:[%s706 + $0x48] sm:$0xff]
        %v1310 = vld [vmem:[%s706 + $0x50] sm:$0xff]
        %v1311 = vld [vmem:[%s706 + $0x58] sm:$0xff]
        %v1312 = vld [vmem:[%s706 + $0x60] sm:$0xff]
        %v1313 = vld [vmem:[%s706 + $0x68] sm:$0xff]
        %v1314 = vld [vmem:[%s706 + $0x70] sm:$0xff]
        %v1315 = vld [vmem:[%s706 + $0x78] sm:$0xff]
        %v1316 = vld [vmem:[%s706 + $0x80] sm:$0xff]
        %v1317 = vld [vmem:[%s706 + $0x88] sm:$0xff]
        %v1318 = vld [vmem:[%s706 + $0x90] sm:$0xff]
        %v1319 = vld [vmem:[%s706 + $0x98] sm:$0xff]
        %v1320 = vld [vmem:[%s706 + $0xa0] sm:$0xff]
        %v1321 = vld [vmem:[%s706 + $0xa8] sm:$0xff]
        %v1322 = vld [vmem:[%s706 + $0xb0] sm:$0xff]
        %v1323 = vld [vmem:[%s706 + $0xb8] sm:$0xff]
        %v1324 = vld [vmem:[%s706 + $0xc0] sm:$0xff]
        %v1325 = vld [vmem:[%s706 + $0xc8] sm:$0xff]
        %v1326 = vld [vmem:[%s706 + $0xd0] sm:$0xff]
        %v1327 = vld [vmem:[%s706 + $0xd8] sm:$0xff]
        %v1328 = vld [vmem:[%s706 + $0xe0] sm:$0xff]
        %v1329 = vld [vmem:[%s706 + $0xe8] sm:$0xff]
        %v1330 = vld [vmem:[%s706 + $0xf0] sm:$0xff]
        %v1331 = vld [vmem:[%s706 + $0xf8] sm:$0xff]
        %v1332 = vld [vmem:[%s825] sm:$0x3]
        %v1334 = vperm.slane %v1332, 0
        %v1335 = vperm.slane %v1332, 1
        %1338 = vmatpush.msra.mxu0 %v1330
        %1339 = vmatpush.msra.mxu0 %v1328
        %1340 = vmatpush.msra.mxu0 %v1326
        %1341 = vmatpush.msra.mxu0 %v1324
        %1342 = vmatpush.msra.mxu0 %v1322
        %1343 = vmatpush.msra.mxu0 %v1320
        %1344 = vmatpush.msra.mxu0 %v1318
        %1345 = vmatpush.msra.mxu0 %v1316
        %1346 = vmatpush.msra.mxu0 %v1314
        %1347 = vmatpush.msra.mxu0 %v1312
        %1348 = vmatpush.msra.mxu0 %v1310
        %1349 = vmatpush.msra.mxu0 %v1308
        %1350 = vmatpush.msra.mxu0 %v1306
        %1351 = vmatpush.msra.mxu0 %v1304
        %1352 = vmatpush.msra.mxu0 %v1302
        %1353 = vmatpush.msra.mxu0 %v1300
        %1354 = vmatmul.f32.gmra.mxu0 %v1298
        %v1355 = vpop.f32.mrf.mxu0
        %v1356 = vadd.f32 %v1334, %v1355
        %1357 = vmatmul.f32.gmra.mxu0 %v1299
        %v1358 = vpop.f32.mrf.mxu0
        %v1359 = vadd.f32 %v1334, %v1358
        %1360 = vdwg.mxu0
        %1361 = vmatpush.msra.mxu0 %v1331
        %1362 = vmatpush.msra.mxu0 %v1329
        %1363 = vmatpush.msra.mxu0 %v1327
        %1364 = vmatpush.msra.mxu0 %v1325
        %1365 = vmatpush.msra.mxu0 %v1323
        %1366 = vmatpush.msra.mxu0 %v1321
        %1367 = vmatpush.msra.mxu0 %v1319
        %1368 = vmatpush.msra.mxu0 %v1317
        %1369 = vmatpush.msra.mxu0 %v1315
        %1370 = vmatpush.msra.mxu0 %v1313
        %1371 = vmatpush.msra.mxu0 %v1311
        %1372 = vmatpush.msra.mxu0 %v1309
        %1373 = vmatpush.msra.mxu0 %v1307
        %1374 = vmatpush.msra.mxu0 %v1305
        %1375 = vmatpush.msra.mxu0 %v1303
        %1376 = vmatpush.msra.mxu0 %v1301
        %1377 = vmatmul.f32.gmra.mxu0 %v1298
        %v1378 = vpop.f32.mrf.mxu0
        %v1379 = vadd.f32 %v1335, %v1378
        %1380 = vmatmul.f32.gmra.mxu0 %v1299
        %v1381 = vpop.f32.mrf.mxu0
        %v1382 = vadd.f32 %v1335, %v1381
        %1383 = vdwg.mxu0
        %v1384 = vmax.f32 %v1356, 0.0
        %v1385 = vmax.f32 %v1379, 0.0
        %v1386 = vmax.f32 %v1359, 0.0
        %v1387 = vmax.f32 %v1382, 0.0
        %v1388 = vld [vmem:[%s716] sm:$0xff]
        %v1389 = vld [vmem:[%s716 + $0x8] sm:$0xff]
        %v1390 = vld [vmem:[%s716 + $0x10] sm:$0xff]
        %v1391 = vld [vmem:[%s716 + $0x18] sm:$0xff]
        %v1392 = vld [vmem:[%s716 + $0x20] sm:$0xff]
        %v1393 = vld [vmem:[%s716 + $0x28] sm:$0xff]
        %v1394 = vld [vmem:[%s716 + $0x30] sm:$0xff]
        %v1395 = vld [vmem:[%s716 + $0x38] sm:$0xff]
        %v1396 = vld [vmem:[%s716 + $0x40] sm:$0xff]
        %v1397 = vld [vmem:[%s716 + $0x48] sm:$0xff]
        %v1398 = vld [vmem:[%s716 + $0x50] sm:$0xff]
        %v1399 = vld [vmem:[%s716 + $0x58] sm:$0xff]
        %v1400 = vld [vmem:[%s716 + $0x60] sm:$0xff]
        %v1401 = vld [vmem:[%s716 + $0x68] sm:$0xff]
        %v1402 = vld [vmem:[%s716 + $0x70] sm:$0xff]
        %v1403 = vld [vmem:[%s716 + $0x78] sm:$0xff]
        %v1404 = vld [vmem:[%s716 + $0x80] sm:$0xff]
        %v1405 = vld [vmem:[%s716 + $0x88] sm:$0xff]
        %v1406 = vld [vmem:[%s716 + $0x90] sm:$0xff]
        %v1407 = vld [vmem:[%s716 + $0x98] sm:$0xff]
        %v1408 = vld [vmem:[%s716 + $0xa0] sm:$0xff]
        %v1409 = vld [vmem:[%s716 + $0xa8] sm:$0xff]
        %v1410 = vld [vmem:[%s716 + $0xb0] sm:$0xff]
        %v1411 = vld [vmem:[%s716 + $0xb8] sm:$0xff]
        %v1412 = vld [vmem:[%s716 + $0xc0] sm:$0xff]
        %v1413 = vld [vmem:[%s716 + $0xc8] sm:$0xff]
        %v1414 = vld [vmem:[%s716 + $0xd0] sm:$0xff]
        %v1415 = vld [vmem:[%s716 + $0xd8] sm:$0xff]
        %v1416 = vld [vmem:[%s716 + $0xe0] sm:$0xff]
        %v1417 = vld [vmem:[%s716 + $0xe8] sm:$0xff]
        %v1418 = vld [vmem:[%s716 + $0xf0] sm:$0xff]
        %v1419 = vld [vmem:[%s716 + $0xf8] sm:$0xff]
        %v1420 = vld [vmem:[%s828] sm:$0x1]
        %v1422 = vperm.slane %v1420, 0
        %1424 = vmatpush.msra.mxu0 %v1403
        %1425 = vmatpush.msra.mxu0 %v1402
        %1426 = vmatpush.msra.mxu0 %v1401
        %1427 = vmatpush.msra.mxu0 %v1400
        %1428 = vmatpush.msra.mxu0 %v1399
        %1429 = vmatpush.msra.mxu0 %v1398
        %1430 = vmatpush.msra.mxu0 %v1397
        %1431 = vmatpush.msra.mxu0 %v1396
        %1432 = vmatpush.msra.mxu0 %v1395
        %1433 = vmatpush.msra.mxu0 %v1394
        %1434 = vmatpush.msra.mxu0 %v1393
        %1435 = vmatpush.msra.mxu0 %v1392
        %1436 = vmatpush.msra.mxu0 %v1391
        %1437 = vmatpush.msra.mxu0 %v1390
        %1438 = vmatpush.msra.mxu0 %v1389
        %1439 = vmatpush.msra.mxu0 %v1388
        %1440 = vmatmul.f32.gmra.mxu0 %v1384
        %v1441 = vpop.f32.mrf.mxu0
        %v1442 = vadd.f32 %v1422, %v1441
        %1443 = vmatmul.f32.gmra.mxu0 %v1386
        %v1444 = vpop.f32.mrf.mxu0
        %v1445 = vadd.f32 %v1422, %v1444
        %1446 = vdwg.mxu0
        %1447 = vmatpush.msra.mxu0 %v1419
        %1448 = vmatpush.msra.mxu0 %v1418
        %1449 = vmatpush.msra.mxu0 %v1417
        %1450 = vmatpush.msra.mxu0 %v1416
        %1451 = vmatpush.msra.mxu0 %v1415
        %1452 = vmatpush.msra.mxu0 %v1414
        %1453 = vmatpush.msra.mxu0 %v1413
        %1454 = vmatpush.msra.mxu0 %v1412
        %1455 = vmatpush.msra.mxu0 %v1411
        %1456 = vmatpush.msra.mxu0 %v1410
        %1457 = vmatpush.msra.mxu0 %v1409
        %1458 = vmatpush.msra.mxu0 %v1408
        %1459 = vmatpush.msra.mxu0 %v1407
        %1460 = vmatpush.msra.mxu0 %v1406
        %1461 = vmatpush.msra.mxu0 %v1405
        %1462 = vmatpush.msra.mxu0 %v1404
        %1463 = vmatmul.f32.gmra.mxu0 %v1385
        %v1464 = vpop.f32.mrf.mxu0
        %v1465 = vadd.f32 %v1442, %v1464
        %1466 = vmatmul.f32.gmra.mxu0 %v1387
        %v1467 = vpop.f32.mrf.mxu0
        %v1468 = vadd.f32 %v1445, %v1467
        %1469 = vdwg.mxu0
        %v1470 = vadd.f32 %v1298, %v1465
        %v1471 = vadd.f32 %v1299, %v1468
        %v1472 = vld [vmem:[%s831] sm:$0x1]
        %v1473 = vld [vmem:[%s725] sm:$0x1]
        %1474 = vadd.xlane.f32.xlu0 %v1470
        %v1475 = vpop.xlane.xlu0 %1474
        %1476 = vadd.xlane.f32.xlu0 %v1471
        %v1477 = vpop.xlane.xlu0 %1476
        %v1478 = vmul.f32 %v1475, %v1253
        %v1479 = vmul.f32 %v1477, %v1253
        %v1480 = vsub.f32 %v1470, %v1478
        %v1481 = vsub.f32 %v1471, %v1479
        %v1482 = vmul.f32 %v1480, %v1480
        %v1483 = vmul.f32 %v1481, %v1481
        %1484 = vadd.xlane.f32.xlu0 %v1482
        %v1485 = vpop.xlane.xlu0 %1484
        %1486 = vadd.xlane.f32.xlu0 %v1483
        %v1487 = vpop.xlane.xlu0 %1486
        %v1488 = vmul.f32 %v1485, %v1253
        %v1489 = vmul.f32 %v1487, %v1253
        %v1490 = vadd.f32 %v1488, 1e-05
        %v1491 = vadd.f32 %v1489, 1e-05
        %v1492 = vrsqrt.pop %v1490
        %v1493 = vmul.f32 %v1492, %v1490
        %v1494 = vmul.f32 %v1493, %v1492
        %v1495 = vmul.f32 0.5, %v1494
        %v1496 = vsub.f32 1.5, %v1495
        %v1497 = vmul.f32 %v1492, %v1496
        %vm1498 = vweird.f32 %v1490
        %vm1499 = vweird.f32 %v1492
        %vm1500 = vmor %vm1498, %vm1499
        %v1501 = vsel %vm1500, %v1492, %v1497
        %v1502 = vrsqrt.pop %v1491
        %v1503 = vmul.f32 %v1502, %v1491
        %v1504 = vmul.f32 %v1503, %v1502
        %v1505 = vmul.f32 0.5, %v1504
        %v1506 = vsub.f32 1.5, %v1505
        %v1507 = vmul.f32 %v1502, %v1506
        %vm1508 = vweird.f32 %v1491
        %vm1509 = vweird.f32 %v1502
        %vm1510 = vmor %vm1508, %vm1509
        %v1511 = vsel %vm1510, %v1502, %v1507
        %v1512 = vmul.f32 %v1480, %v1501
        %v1513 = vmul.f32 %v1481, %v1511
        %v1515 = vperm.slane %v1472, 0
        %v1517 = vmul.f32 %v1512, %v1515
        %v1518 = vmul.f32 %v1513, %v1515
        %v1520 = vperm.slane %v1473, 0
        %v1522 = vadd.f32 %v1517, %v1520
        %v1523 = vadd.f32 %v1518, %v1520
        %1524 = vst [vmem:[#allocation2] sm:$0xff] %v1522
        %1525 = vst [vmem:[#allocation2 + $0x8] sm:$0xff] %v1523
        %p1526 = scmp.eq.s32.totalorder %s47, 1
        // Predicated region
        $region113: #{tpu_custom_call.1} parent=71 // pred_check
          %p1527 = pneg %p1526
        $region114: #{tpu_custom_call.1} parent=71 // pred_check_branch
          %1529 = sbr.rel (%p1527) target = $region116
        $region115: #{tpu_custom_call.1} parent=71 // pred_region
          %1530 = vst [vmem:[%s818] sm:$0xff] %v1522
          %1531 = vst [vmem:[%s818 + $0x8] sm:$0xff] %v1523
        $region116: #{tpu_custom_call.1} parent=71 // pred_fallthru
          _
        %s1532 = sand.u32 %s400, 1
        %s1533 = scalar_lea.sflag [#allocation5], %s1532
        %s1534 = sand.u32 %s400, 1
        %s1535 = smul.addr %s1534, 16
        %s1536 = scalar_lea.vmem [#allocation18], %s1535
        // Predicated region
        $region117: #{tpu_custom_call.1} parent=71 // pred_check
          %p1537 = pneg %p410
        $region118: #{tpu_custom_call.1} parent=71 // pred_check_branch
          %1539 = sbr.rel (%p1537) target = $region120
        $region119: #{tpu_custom_call.1} parent=71 // pred_region
          %1541 = vsyncadd %s1533, 0
          %s1542 = smul.addr %s46, 2
          %s1543 = smul.addr %s1542, 8
          %s1544 = scalar_lea.hbm %s13, %s1543
          %s1545 = sshll.u32 %s1536, 4
          %s1546 = int_to_ptr.vmem [resolvable:$true] %s1545
          %s1547 = sshll.u32 %s1544, 4
          %s1548 = int_to_ptr.hbm [resolvable:$true] %s1547
          %1553 = dma.vmem_to_hbm [thread:$0]  %s1546, 256, %s1548, %s1533, 128, 128, 8
        $region120: #{tpu_custom_call.1} parent=71 // pred_fallthru
          _
      $region72: #{tpu_custom_call.1} parent=5 // pred_fallthru
        _
      %p1554 = scmp.le.s32.totalorder 2, %s37
      // Predicated region
      $region121: #{tpu_custom_call.1} parent=5 // pred_check
        %p1555 = pneg %p1554
      $region122: #{tpu_custom_call.1} parent=5 // pred_check_branch
        %1557 = sbr.rel (%p1555) target = $region124
      $region123: #{tpu_custom_call.1} parent=5 // pred_region
        %s1558 = ssub.s32 %s37, 2
        // Predicated region
        $region125: #{tpu_custom_call.1} parent=123 // pred_check
          %p1559 = pneg %p416
        $region126: #{tpu_custom_call.1} parent=123 // pred_check_branch
          %1561 = sbr.rel (%p1559) target = $region128
        $region127: #{tpu_custom_call.1} parent=123 // pred_region
          %s1562 = sand.u32 %s401, 1
          %s1563 = scalar_lea.sflag [#allocation5], %s1562
          %s1564 = sand.u32 %s401, 1
          %s1565 = smul.addr %s1564, 16
          %s1566 = scalar_lea.vmem [#allocation18], %s1565
          %1568 = dma.done %s1563, 256
        $region128: #{tpu_custom_call.1} parent=123 // pred_fallthru
          _
      $region124: #{tpu_custom_call.1} parent=5 // pred_fallthru
        _
    $region6: #{tpu_custom_call.1} parent=1 // loop_footer
      %s41 = sadd.s32 1, %s37
    $region7: #{tpu_custom_call.1} parent=1 // loop_footer_branch
      %36 = sbr.rel target = $region3
    $region8: #{tpu_custom_call.1} parent=1 // loop_exit
      _
    %1569 = vsyncpa [#allocation4], 1
    %s1570 = scalar_lea.sflag [#allocation4], 1
    %1571 = vsyncpa %s1570, 1
    %1572 = vsyncpa [#allocation7], 1
    %s1573 = scalar_lea.sflag [#allocation7], 1
    %1574 = vsyncpa %s1573, 1
    %1575 = vsyncpa [#allocation10], 1
    %s1576 = scalar_lea.sflag [#allocation10], 1
    %1577 = vsyncpa %s1576, 1
    %1578 = vsyncpa [#allocation13], 1
    %s1579 = scalar_lea.sflag [#allocation13], 1
    %1580 = vsyncpa %s1579, 1
    %1581 = vsyncpa [#allocation16], 1
    %s1582 = scalar_lea.sflag [#allocation16], 1
    %1583 = vsyncpa %s1582, 1
    %1584 = vsyncpa [#allocation5], 1
    %s1585 = scalar_lea.sflag [#allocation5], 1
    %1586 = vsyncpa %s1585, 1

</llo_original>
